<compile_context>
chip_gen: v7x
topology: tpu7x:2x2x1
jax: 0.10.0
libtpu: 0.0.40
codegen_flags: <defaults>
</compile_context>

<pallas_src>
import numpy as np
import jax
import jax.numpy as jnp
from jax.experimental import pallas as pl
from jax.experimental.pallas import tpu as pltpu


# ----------------------------- config (small) -------------------------------
B = 2            # batch
H = 8            # horizon
D = 16           # observation_dim
HID = 32         # denoiser hidden dim
HL = 1           # history_length
T = 16           # n_timesteps (reduced from 1000 for a fast demo; schedule
                 # formula is identical)
BH = B * H
HD = H * D       # 128  (lane-dense trajectory width)
HHID = H * HID   # 256  (lane-dense hidden width, block-diagonal)


# ----------------------- diffusion schedule (host side) ---------------------
def cosine_beta_schedule(timesteps, s=0.008):
    steps = timesteps + 1
    x = np.linspace(0, steps, steps)
    alphas_cumprod = np.cos(((x / steps) + s) / (1 + s) * np.pi * 0.5) ** 2
    alphas_cumprod = alphas_cumprod / alphas_cumprod[0]
    betas = 1 - (alphas_cumprod[1:] / alphas_cumprod[:-1])
    return np.clip(betas, 0, 0.999)


def make_schedules(n_timesteps):
    betas = cosine_beta_schedule(n_timesteps).astype(np.float64)
    alphas = 1.0 - betas
    acp = np.cumprod(alphas, axis=0)
    acp_prev = np.concatenate([np.ones(1), acp[:-1]])
    sqrt_recip_ac = np.sqrt(1.0 / acp)
    sqrt_recipm1_ac = np.sqrt(1.0 / acp - 1.0)
    post_var = betas * (1.0 - acp_prev) / (1.0 - acp)
    plogvar = np.log(np.clip(post_var, 1e-20, None))
    pmc1 = betas * np.sqrt(acp_prev) / (1.0 - acp)
    pmc2 = (1.0 - acp_prev) * np.sqrt(alphas) / (1.0 - acp)

    # fused per-step coefficients used by the kernel (clip_denoised=False):
    #   x_new = c_x[t]*x - c_eps[t]*eps + sigma[t]*noise   (noise ~ N(0,1))
    c_x = pmc1 * sqrt_recip_ac + pmc2
    c_eps = pmc1 * sqrt_recipm1_ac
    sigma = 0.5 * np.exp(0.5 * plogvar)
    sigma[0] = 0.0                       # nonzero_mask at t == 0

    fused = (c_x.astype(np.float32), c_eps.astype(np.float32),
             sigma.astype(np.float32))
    unfused = tuple(jnp.asarray(a, jnp.float32) for a in
                    (sqrt_recip_ac, sqrt_recipm1_ac, pmc1, pmc2, plogvar))
    return fused, unfused


# ------------------------------ Pallas kernel --------------------------------
def make_p_sample_kernel(c_x, c_eps, sigma):
    # bake schedule scalars as compile-time immediates (loop is fully unrolled)
    c_x = [float(v) for v in c_x]
    c_eps = [float(v) for v in c_eps]
    sigma = [float(v) for v in sigma]

    def kernel(xinit_ref,   # (B, HD)        f32
               hist_ref,    # (B, HD)        f32  history values, 0 elsewhere
               mask_ref,    # (B, HD)        f32  0 on history cols, 1 elsewhere
               noise_ref,   # (T, B, HD)     f32  per-step standard normal
               w1_ref,      # (HD, HHID)     bf16 block-diagonal
               w2_ref,      # (HHID, HD)     bf16 block-diagonal
               bias_ref,    # (T, 1, HHID)   f32  b1 + (t/T)*wt, reverse order
               b2_ref,      # (1, HD)        f32
               out_ref):    # (B, HD)        f32
        # ---- hoist loop-invariant loads / broadcasts (done exactly once) ----
        W1 = w1_ref[...]
        W2 = w2_ref[...]
        B2 = jnp.broadcast_to(b2_ref[...], (B, HD))
        MASK = mask_ref[...]
        HIST = hist_ref[...]

        x = xinit_ref[...]                     # (B, HD) f32, carried in vregs

        # Fully unrolled reversed(range(T)) chain (T=16): full LLO visibility.
        for i in range(T):
            t = T - 1 - i

            # ---- denoiser: eps = model(x, t)  (synthetic bf16 tanh MLP) ----
            xb = x.astype(jnp.bfloat16)                     # cast at MXU edge
            z = jnp.tanh(
                jnp.dot(xb, W1, preferred_element_type=jnp.float32)
                + bias_ref[i])                              # (B, HHID) f32
            eps = jnp.dot(z.astype(jnp.bfloat16), W2,
                          preferred_element_type=jnp.float32) + B2

            # ---- fused predict_start_from_noise + q_posterior + p_sample ---
            # (clip_denoised=False -> no clamp)
            x_new = c_x[t] * x - c_eps[t] * eps
            if sigma[t] != 0.0:                             # static: t == 0
                x_new = x_new + sigma[t] * noise_ref[i]

            # ---- history_cover(x, history, 0, history_length) via mask -----
            x = MASK * x_new + HIST

        out_ref[...] = x

    return kernel


def p_sample_loop(x_init2, hist2, mask2, noise2, w1_blk, w2_blk, bias_tab,
                  b2_blk, fused):
    kernel = make_p_sample_kernel(*fused)
    vmem = lambda: pl.BlockSpec(memory_space=pltpu.MemorySpace.VMEM)
    return pl.pallas_call(
        kernel,
        out_shape=jax.ShapeDtypeStruct((B, HD), jnp.float32),
        in_specs=[vmem() for _ in range(8)],
        out_specs=vmem(),
    )(x_init2, hist2, mask2, noise2, w1_blk, w2_blk, bias_tab, b2_blk)


# --------------------------- pure-JAX reference ------------------------------
# Faithful (unfused) reimplementation of the PyTorch p_sample_loop math, with
# the same bf16-at-the-dot synthetic denoiser.
def p_sample_loop_ref(x_init, history, noise_all, params, coeffs):
    w1, b1, wt, w2, b2 = params            # w1, w2 are bf16
    src_ac, srm1_ac, pmc1, pmc2, plogvar = coeffs
    x = x_init
    for i in range(T):
        t = T - 1 - i
        x2d = x.reshape(BH, D)
        z = jnp.tanh(jnp.dot(x2d.astype(jnp.bfloat16), w1,
                             preferred_element_type=jnp.float32)
                     + b1 + (t / T) * wt)
        eps = (jnp.dot(z.astype(jnp.bfloat16), w2,
                       preferred_element_type=jnp.float32)
               + b2).reshape(B, H, D)
        x_recon = src_ac[t] * x - srm1_ac[t] * eps
        mean = pmc1[t] * x_recon + pmc2[t] * x
        nz = 0.0 if t == 0 else 1.0
        x = mean + nz * jnp.exp(0.5 * plogvar[t]) * 0.5 * noise_all[i]
        x = x.at[:, :HL, :].set(history)
    return x


# ---------------------------------- main -------------------------------------
if __name__ == "__main__":
    key = jax.random.PRNGKey(0)
    k_hist, k_x, k_noise, k_w1, k_b1, k_wt, k_w2, k_b2 = jax.random.split(key, 8)

    # obs_history / conditioning: (B, history_length, D_obs)
    history = jax.random.normal(k_hist, (B, HL, D), jnp.float32)

    # x = 0.5 * randn(shape);  x = history_cover(x, history, 0, HL)
    x_init = 0.5 * jax.random.normal(k_x, (B, H, D), jnp.float32)
    x_init = x_init.at[:, :HL, :].set(history)

    # per-reverse-step noise (standard normal; 0.5 folded into sigma[t])
    noise_all = jax.random.normal(k_noise, (T, B, H, D), jnp.float32)

    # deterministic synthetic denoiser weights (matmul weights in bf16)
    w1 = (0.1 * jax.random.normal(k_w1, (D, HID), jnp.float32)).astype(jnp.bfloat16)
    b1 = 0.1 * jax.random.normal(k_b1, (1, HID), jnp.float32)
    wt = 0.1 * jax.random.normal(k_wt, (1, HID), jnp.float32)
    w2 = (0.1 * jax.random.normal(k_w2, (HID, D), jnp.float32)).astype(jnp.bfloat16)
    b2 = 0.1 * jax.random.normal(k_b2, (1, D), jnp.float32)

    fused, unfused = make_schedules(T)

    # -------- host-side lane-dense repack: (B, H*D) + block-diag weights ----
    x_init2 = x_init.reshape(B, HD)
    noise2 = noise_all.reshape(T, B, HD)

    hist_flat = np.zeros((B, HD), np.float32)
    hist_flat[:, :HL * D] = np.asarray(history).reshape(B, HL * D)
    mask_flat = np.ones((B, HD), np.float32)
    mask_flat[:, :HL * D] = 0.0
    hist2 = jnp.asarray(hist_flat)
    mask2 = jnp.asarray(mask_flat)

    w1_np = np.asarray(w1.astype(jnp.float32))   # bf16-rounded values, f32 host
    w2_np = np.asarray(w2.astype(jnp.float32))
    W1_blk = np.zeros((HD, HHID), np.float32)
    W2_blk = np.zeros((HHID, HD), np.float32)
    for h in range(H):
        W1_blk[h * D:(h + 1) * D, h * HID:(h + 1) * HID] = w1_np
        W2_blk[h * HID:(h + 1) * HID, h * D:(h + 1) * D] = w2_np
    W1_blk = jnp.asarray(W1_blk, jnp.bfloat16)
    W2_blk = jnp.asarray(W2_blk, jnp.bfloat16)

    b1_np = np.asarray(b1)
    wt_np = np.asarray(wt)
    b2_np = np.asarray(b2)
    b1_blk = np.tile(b1_np, (1, H))                          # (1, HHID)
    wt_blk = np.tile(wt_np, (1, H))                          # (1, HHID)
    b2_blk = jnp.asarray(np.tile(b2_np, (1, H)), jnp.float32)  # (1, HD)
    # bias table indexed by loop step i (t = T-1-i):  b1 + (t/T)*wt
    bias_tab = np.stack(
        [b1_blk + np.float32((T - 1 - i) / T) * wt_blk for i in range(T)],
        axis=0).astype(np.float32)                           # (T, 1, HHID)
    bias_tab = jnp.asarray(bias_tab)

    # --------------------------- run the kernel -----------------------------
    out2d = p_sample_loop(x_init2, hist2, mask2, noise2,
                          W1_blk, W2_blk, bias_tab, b2_blk, fused)
    out = jax.block_until_ready(out2d).reshape(B, H, D)

    # ----------------------------- verification -----------------------------
    params = (w1, b1, wt, w2, b2)
    ref = p_sample_loop_ref(x_init, history, noise_all, params, unfused)
    ref = jax.block_until_ready(ref)
    # Tolerance: bf16 denoiser matmuls (block-diag MXU vs per-row XLA dot) and
    # fused-f64 vs unfused-f32 coefficient rounding, amplified over the
    # reverse chain (prod 1/sqrt(alpha_t) ~ 1e2), justify a relative 5e-3.
    np.testing.assert_allclose(np.asarray(out), np.asarray(ref),
                               rtol=5e-3, atol=5e-3)
    assert out.shape == (B, H, D)
    print("KERNEL_OK")
</pallas_src>

<mosaic_0001>
module attributes {stable_mosaic.version = 11 : i64} {
  func.func @kernel(%arg0: memref<2x128xf32, #tpu.memory_space<vmem>>, %arg1: memref<2x128xf32, #tpu.memory_space<vmem>>, %arg2: memref<2x128xf32, #tpu.memory_space<vmem>>, %arg3: memref<16x2x128xf32, #tpu.memory_space<vmem>>, %arg4: memref<128x256xbf16, #tpu.memory_space<vmem>>, %arg5: memref<256x128xbf16, #tpu.memory_space<vmem>>, %arg6: memref<16x1x256xf32, #tpu.memory_space<vmem>>, %arg7: memref<1x128xf32, #tpu.memory_space<vmem>>, %arg8: memref<2x128xf32, #tpu.memory_space<vmem>>) attributes {dimension_semantics = [], scalar_prefetch = 0 : i64, scratch_operands = 0 : i64, tpu.core_type = #tpu.core_type<tc>} {
    %c0 = arith.constant 0 : index
    %c0_0 = arith.constant 0 : index
    %0 = vector.load %arg4[%c0, %c0_0] : memref<128x256xbf16, #tpu.memory_space<vmem>>, vector<128x256xbf16>
    %c0_1 = arith.constant 0 : index
    %c0_2 = arith.constant 0 : index
    %1 = vector.load %arg5[%c0_1, %c0_2] : memref<256x128xbf16, #tpu.memory_space<vmem>>, vector<256x128xbf16>
    %c0_3 = arith.constant 0 : index
    %c0_4 = arith.constant 0 : index
    %2 = vector.load %arg7[%c0_3, %c0_4] : memref<1x128xf32, #tpu.memory_space<vmem>>, vector<1x128xf32>
    %3 = vector.shape_cast %2 : vector<1x128xf32> to vector<1x128xf32>
    %4 = vector.broadcast %3 : vector<1x128xf32> to vector<2x128xf32>
    %c0_5 = arith.constant 0 : index
    %c0_6 = arith.constant 0 : index
    %5 = vector.load %arg2[%c0_5, %c0_6] : memref<2x128xf32, #tpu.memory_space<vmem>>, vector<2x128xf32>
    %c0_7 = arith.constant 0 : index
    %c0_8 = arith.constant 0 : index
    %6 = vector.load %arg1[%c0_7, %c0_8] : memref<2x128xf32, #tpu.memory_space<vmem>>, vector<2x128xf32>
    %c0_9 = arith.constant 0 : index
    %c0_10 = arith.constant 0 : index
    %7 = vector.load %arg0[%c0_9, %c0_10] : memref<2x128xf32, #tpu.memory_space<vmem>>, vector<2x128xf32>
    %8 = arith.truncf %7 : vector<2x128xf32> to vector<2x128xbf16>
    %cst = arith.constant dense<0.000000e+00> : vector<2x256xf32>
    %9 = tpu.matmul %8, %0, %cst {dimension_numbers = #tpu.dot_dimension_numbers<[1], [0], [0], [1], [0, 0, 1, 1], [], []>} : vector<2x128xbf16>, vector<128x256xbf16>, vector<2x256xf32> -> vector<2x256xf32>
    %c0_11 = arith.constant 0 : index
    %c0_12 = arith.constant 0 : index
    %c0_13 = arith.constant 0 : index
    %10 = vector.load %arg6[%c0_11, %c0_12, %c0_13] : memref<16x1x256xf32, #tpu.memory_space<vmem>>, vector<1x1x256xf32>
    %11 = vector.shape_cast %10 : vector<1x1x256xf32> to vector<1x256xf32>
    %12 = vector.broadcast %11 : vector<1x256xf32> to vector<2x256xf32>
    %13 = arith.addf %9, %12 : vector<2x256xf32>
    %14 = math.tanh %13 : vector<2x256xf32>
    %15 = arith.truncf %14 : vector<2x256xf32> to vector<2x256xbf16>
    %cst_14 = arith.constant dense<0.000000e+00> : vector<2x128xf32>
    %16 = tpu.matmul %15, %1, %cst_14 {dimension_numbers = #tpu.dot_dimension_numbers<[1], [0], [0], [1], [0, 0, 1, 1], [], []>} : vector<2x256xbf16>, vector<256x128xbf16>, vector<2x128xf32> -> vector<2x128xf32>
    %17 = arith.addf %16, %4 : vector<2x128xf32>
    %cst_15 = arith.constant 31.622776 : f32
    %18 = vector.broadcast %cst_15 : f32 to vector<2x128xf32>
    %19 = arith.mulf %18, %7 : vector<2x128xf32>
    %cst_16 = arith.constant 31.5913029 : f32
    %20 = vector.broadcast %cst_16 : f32 to vector<2x128xf32>
    %21 = arith.mulf %20, %17 : vector<2x128xf32>
    %22 = arith.subf %19, %21 : vector<2x128xf32>
    %c0_17 = arith.constant 0 : index
    %c0_18 = arith.constant 0 : index
    %c0_19 = arith.constant 0 : index
    %23 = vector.load %arg3[%c0_17, %c0_18, %c0_19] : memref<16x2x128xf32, #tpu.memory_space<vmem>>, vector<1x2x128xf32>
    %24 = vector.shape_cast %23 : vector<1x2x128xf32> to vector<2x128xf32>
    %cst_20 = arith.constant 0.497383505 : f32
    %25 = vector.broadcast %cst_20 : f32 to vector<2x128xf32>
    %26 = arith.mulf %25, %24 : vector<2x128xf32>
    %27 = arith.addf %22, %26 : vector<2x128xf32>
    %28 = arith.mulf %5, %27 : vector<2x128xf32>
    %29 = arith.addf %28, %6 : vector<2x128xf32>
    %30 = arith.truncf %29 : vector<2x128xf32> to vector<2x128xbf16>
    %cst_21 = arith.constant dense<0.000000e+00> : vector<2x256xf32>
    %31 = tpu.matmul %30, %0, %cst_21 {dimension_numbers = #tpu.dot_dimension_numbers<[1], [0], [0], [1], [0, 0, 1, 1], [], []>} : vector<2x128xbf16>, vector<128x256xbf16>, vector<2x256xf32> -> vector<2x256xf32>
    %c1 = arith.constant 1 : index
    %c0_22 = arith.constant 0 : index
    %c0_23 = arith.constant 0 : index
    %32 = vector.load %arg6[%c1, %c0_22, %c0_23] : memref<16x1x256xf32, #tpu.memory_space<vmem>>, vector<1x1x256xf32>
    %33 = vector.shape_cast %32 : vector<1x1x256xf32> to vector<1x256xf32>
    %34 = vector.broadcast %33 : vector<1x256xf32> to vector<2x256xf32>
    %35 = arith.addf %31, %34 : vector<2x256xf32>
    %36 = math.tanh %35 : vector<2x256xf32>
    %37 = arith.truncf %36 : vector<2x256xf32> to vector<2x256xbf16>
    %cst_24 = arith.constant dense<0.000000e+00> : vector<2x128xf32>
    %38 = tpu.matmul %37, %1, %cst_24 {dimension_numbers = #tpu.dot_dimension_numbers<[1], [0], [0], [1], [0, 0, 1, 1], [], []>} : vector<2x256xbf16>, vector<256x128xbf16>, vector<2x128xf32> -> vector<2x128xf32>
    %39 = arith.addf %38, %4 : vector<2x128xf32>
    %cst_25 = arith.constant 1.99052155 : f32
    %40 = vector.broadcast %cst_25 : f32 to vector<2x128xf32>
    %41 = arith.mulf %40, %29 : vector<2x128xf32>
    %cst_26 = arith.constant 1.49522805 : f32
    %42 = vector.broadcast %cst_26 : f32 to vector<2x128xf32>
    %43 = arith.mulf %42, %39 : vector<2x128xf32>
    %44 = arith.subf %41, %43 : vector<2x128xf32>
    %c1_27 = arith.constant 1 : index
    %c0_28 = arith.constant 0 : index
    %c0_29 = arith.constant 0 : index
    %45 = vector.load %arg3[%c1_27, %c0_28, %c0_29] : memref<16x2x128xf32, #tpu.memory_space<vmem>>, vector<1x2x128xf32>
    %46 = vector.shape_cast %45 : vector<1x2x128xf32> to vector<2x128xf32>
    %cst_30 = arith.constant 0.426165879 : f32
    %47 = vector.broadcast %cst_30 : f32 to vector<2x128xf32>
    %48 = arith.mulf %47, %46 : vector<2x128xf32>
    %49 = arith.addf %44, %48 : vector<2x128xf32>
    %50 = arith.mulf %5, %49 : vector<2x128xf32>
    %51 = arith.addf %50, %6 : vector<2x128xf32>
    %52 = arith.truncf %51 : vector<2x128xf32> to vector<2x128xbf16>
    %cst_31 = arith.constant dense<0.000000e+00> : vector<2x256xf32>
    %53 = tpu.matmul %52, %0, %cst_31 {dimension_numbers = #tpu.dot_dimension_numbers<[1], [0], [0], [1], [0, 0, 1, 1], [], []>} : vector<2x128xbf16>, vector<128x256xbf16>, vector<2x256xf32> -> vector<2x256xf32>
    %c2 = arith.constant 2 : index
    %c0_32 = arith.constant 0 : index
    %c0_33 = arith.constant 0 : index
    %54 = vector.load %arg6[%c2, %c0_32, %c0_33] : memref<16x1x256xf32, #tpu.memory_space<vmem>>, vector<1x1x256xf32>
    %55 = vector.shape_cast %54 : vector<1x1x256xf32> to vector<1x256xf32>
    %56 = vector.broadcast %55 : vector<1x256xf32> to vector<2x256xf32>
    %57 = arith.addf %53, %56 : vector<2x256xf32>
    %58 = math.tanh %57 : vector<2x256xf32>
    %59 = arith.truncf %58 : vector<2x256xf32> to vector<2x256xbf16>
    %cst_34 = arith.constant dense<0.000000e+00> : vector<2x128xf32>
    %60 = tpu.matmul %59, %1, %cst_34 {dimension_numbers = #tpu.dot_dimension_numbers<[1], [0], [0], [1], [0, 0, 1, 1], [], []>} : vector<2x256xbf16>, vector<256x128xbf16>, vector<2x128xf32> -> vector<2x128xf32>
    %61 = arith.addf %60, %4 : vector<2x128xf32>
    %cst_35 = arith.constant 1.4881407 : f32
    %62 = vector.broadcast %cst_35 : f32 to vector<2x128xf32>
    %63 = arith.mulf %62, %51 : vector<2x128xf32>
    %cst_36 = arith.constant 0.831896424 : f32
    %64 = vector.broadcast %cst_36 : f32 to vector<2x128xf32>
    %65 = arith.mulf %64, %61 : vector<2x128xf32>
    %66 = arith.subf %63, %65 : vector<2x128xf32>
    %c2_37 = arith.constant 2 : index
    %c0_38 = arith.constant 0 : index
    %c0_39 = arith.constant 0 : index
    %67 = vector.load %arg3[%c2_37, %c0_38, %c0_39] : memref<16x2x128xf32, #tpu.memory_space<vmem>>, vector<1x2x128xf32>
    %68 = vector.shape_cast %67 : vector<1x2x128xf32> to vector<2x128xf32>
    %cst_40 = arith.constant 0.361424625 : f32
    %69 = vector.broadcast %cst_40 : f32 to vector<2x128xf32>
    %70 = arith.mulf %69, %68 : vector<2x128xf32>
    %71 = arith.addf %66, %70 : vector<2x128xf32>
    %72 = arith.mulf %5, %71 : vector<2x128xf32>
    %73 = arith.addf %72, %6 : vector<2x128xf32>
    %74 = arith.truncf %73 : vector<2x128xf32> to vector<2x128xbf16>
    %cst_41 = arith.constant dense<0.000000e+00> : vector<2x256xf32>
    %75 = tpu.matmul %74, %0, %cst_41 {dimension_numbers = #tpu.dot_dimension_numbers<[1], [0], [0], [1], [0, 0, 1, 1], [], []>} : vector<2x128xbf16>, vector<128x256xbf16>, vector<2x256xf32> -> vector<2x256xf32>
    %c3 = arith.constant 3 : index
    %c0_42 = arith.constant 0 : index
    %c0_43 = arith.constant 0 : index
    %76 = vector.load %arg6[%c3, %c0_42, %c0_43] : memref<16x1x256xf32, #tpu.memory_space<vmem>>, vector<1x1x256xf32>
    %77 = vector.shape_cast %76 : vector<1x1x256xf32> to vector<1x256xf32>
    %78 = vector.broadcast %77 : vector<1x256xf32> to vector<2x256xf32>
    %79 = arith.addf %75, %78 : vector<2x256xf32>
    %80 = math.tanh %79 : vector<2x256xf32>
    %81 = arith.truncf %80 : vector<2x256xf32> to vector<2x256xbf16>
    %cst_44 = arith.constant dense<0.000000e+00> : vector<2x128xf32>
    %82 = tpu.matmul %81, %1, %cst_44 {dimension_numbers = #tpu.dot_dimension_numbers<[1], [0], [0], [1], [0, 0, 1, 1], [], []>} : vector<2x256xbf16>, vector<256x128xbf16>, vector<2x128xf32> -> vector<2x128xf32>
    %83 = arith.addf %82, %4 : vector<2x128xf32>
    %cst_45 = arith.constant 1.31854212 : f32
    %84 = vector.broadcast %cst_45 : f32 to vector<2x128xf32>
    %85 = arith.mulf %84, %73 : vector<2x128xf32>
    %cst_46 = arith.constant 0.584923923 : f32
    %86 = vector.broadcast %cst_46 : f32 to vector<2x128xf32>
    %87 = arith.mulf %86, %83 : vector<2x128xf32>
    %88 = arith.subf %85, %87 : vector<2x128xf32>
    %c3_47 = arith.constant 3 : index
    %c0_48 = arith.constant 0 : index
    %c0_49 = arith.constant 0 : index
    %89 = vector.load %arg3[%c3_47, %c0_48, %c0_49] : memref<16x2x128xf32, #tpu.memory_space<vmem>>, vector<1x2x128xf32>
    %90 = vector.shape_cast %89 : vector<1x2x128xf32> to vector<2x128xf32>
    %cst_50 = arith.constant 0.314808398 : f32
    %91 = vector.broadcast %cst_50 : f32 to vector<2x128xf32>
    %92 = arith.mulf %91, %90 : vector<2x128xf32>
    %93 = arith.addf %88, %92 : vector<2x128xf32>
    %94 = arith.mulf %5, %93 : vector<2x128xf32>
    %95 = arith.addf %94, %6 : vector<2x128xf32>
    %96 = arith.truncf %95 : vector<2x128xf32> to vector<2x128xbf16>
    %cst_51 = arith.constant dense<0.000000e+00> : vector<2x256xf32>
    %97 = tpu.matmul %96, %0, %cst_51 {dimension_numbers = #tpu.dot_dimension_numbers<[1], [0], [0], [1], [0, 0, 1, 1], [], []>} : vector<2x128xbf16>, vector<128x256xbf16>, vector<2x256xf32> -> vector<2x256xf32>
    %c4 = arith.constant 4 : index
    %c0_52 = arith.constant 0 : index
    %c0_53 = arith.constant 0 : index
    %98 = vector.load %arg6[%c4, %c0_52, %c0_53] : memref<16x1x256xf32, #tpu.memory_space<vmem>>, vector<1x1x256xf32>
    %99 = vector.shape_cast %98 : vector<1x1x256xf32> to vector<1x256xf32>
    %100 = vector.broadcast %99 : vector<1x256xf32> to vector<2x256xf32>
    %101 = arith.addf %97, %100 : vector<2x256xf32>
    %102 = math.tanh %101 : vector<2x256xf32>
    %103 = arith.truncf %102 : vector<2x256xf32> to vector<2x256xbf16>
    %cst_54 = arith.constant dense<0.000000e+00> : vector<2x128xf32>
    %104 = tpu.matmul %103, %1, %cst_54 {dimension_numbers = #tpu.dot_dimension_numbers<[1], [0], [0], [1], [0, 0, 1, 1], [], []>} : vector<2x256xbf16>, vector<256x128xbf16>, vector<2x128xf32> -> vector<2x128xf32>
    %105 = arith.addf %104, %4 : vector<2x128xf32>
    %cst_55 = arith.constant 1.23210824 : f32
    %106 = vector.broadcast %cst_55 : f32 to vector<2x128xf32>
    %107 = arith.mulf %106, %95 : vector<2x128xf32>
    %cst_56 = arith.constant 0.454557717 : f32
    %108 = vector.broadcast %cst_56 : f32 to vector<2x128xf32>
    %109 = arith.mulf %108, %105 : vector<2x128xf32>
    %110 = arith.subf %107, %109 : vector<2x128xf32>
    %c4_57 = arith.constant 4 : index
    %c0_58 = arith.constant 0 : index
    %c0_59 = arith.constant 0 : index
    %111 = vector.load %arg3[%c4_57, %c0_58, %c0_59] : memref<16x2x128xf32, #tpu.memory_space<vmem>>, vector<1x2x128xf32>
    %112 = vector.shape_cast %111 : vector<1x2x128xf32> to vector<2x128xf32>
    %cst_60 = arith.constant 0.279046535 : f32
    %113 = vector.broadcast %cst_60 : f32 to vector<2x128xf32>
    %114 = arith.mulf %113, %112 : vector<2x128xf32>
    %115 = arith.addf %110, %114 : vector<2x128xf32>
    %116 = arith.mulf %5, %115 : vector<2x128xf32>
    %117 = arith.addf %116, %6 : vector<2x128xf32>
    %118 = arith.truncf %117 : vector<2x128xf32> to vector<2x128xbf16>
    %cst_61 = arith.constant dense<0.000000e+00> : vector<2x256xf32>
    %119 = tpu.matmul %118, %0, %cst_61 {dimension_numbers = #tpu.dot_dimension_numbers<[1], [0], [0], [1], [0, 0, 1, 1], [], []>} : vector<2x128xbf16>, vector<128x256xbf16>, vector<2x256xf32> -> vector<2x256xf32>
    %c5 = arith.constant 5 : index
    %c0_62 = arith.constant 0 : index
    %c0_63 = arith.constant 0 : index
    %120 = vector.load %arg6[%c5, %c0_62, %c0_63] : memref<16x1x256xf32, #tpu.memory_space<vmem>>, vector<1x1x256xf32>
    %121 = vector.shape_cast %120 : vector<1x1x256xf32> to vector<1x256xf32>
    %122 = vector.broadcast %121 : vector<1x256xf32> to vector<2x256xf32>
    %123 = arith.addf %119, %122 : vector<2x256xf32>
    %124 = math.tanh %123 : vector<2x256xf32>
    %125 = arith.truncf %124 : vector<2x256xf32> to vector<2x256xbf16>
    %cst_64 = arith.constant dense<0.000000e+00> : vector<2x128xf32>
    %126 = tpu.matmul %125, %1, %cst_64 {dimension_numbers = #tpu.dot_dimension_numbers<[1], [0], [0], [1], [0, 0, 1, 1], [], []>} : vector<2x256xbf16>, vector<256x128xbf16>, vector<2x128xf32> -> vector<2x128xf32>
    %127 = arith.addf %126, %4 : vector<2x128xf32>
    %cst_65 = arith.constant 1.17890453 : f32
    %128 = vector.broadcast %cst_65 : f32 to vector<2x128xf32>
    %129 = arith.mulf %128, %117 : vector<2x128xf32>
    %cst_66 = arith.constant 0.374162704 : f32
    %130 = vector.broadcast %cst_66 : f32 to vector<2x128xf32>
    %131 = arith.mulf %130, %127 : vector<2x128xf32>
    %132 = arith.subf %129, %131 : vector<2x128xf32>
    %c5_67 = arith.constant 5 : index
    %c0_68 = arith.constant 0 : index
    %c0_69 = arith.constant 0 : index
    %133 = vector.load %arg3[%c5_67, %c0_68, %c0_69] : memref<16x2x128xf32, #tpu.memory_space<vmem>>, vector<1x2x128xf32>
    %134 = vector.shape_cast %133 : vector<1x2x128xf32> to vector<2x128xf32>
    %cst_70 = arith.constant 0.249909103 : f32
    %135 = vector.broadcast %cst_70 : f32 to vector<2x128xf32>
    %136 = arith.mulf %135, %134 : vector<2x128xf32>
    %137 = arith.addf %132, %136 : vector<2x128xf32>
    %138 = arith.mulf %5, %137 : vector<2x128xf32>
    %139 = arith.addf %138, %6 : vector<2x128xf32>
    %140 = arith.truncf %139 : vector<2x128xf32> to vector<2x128xbf16>
    %cst_71 = arith.constant dense<0.000000e+00> : vector<2x256xf32>
    %141 = tpu.matmul %140, %0, %cst_71 {dimension_numbers = #tpu.dot_dimension_numbers<[1], [0], [0], [1], [0, 0, 1, 1], [], []>} : vector<2x128xbf16>, vector<128x256xbf16>, vector<2x256xf32> -> vector<2x256xf32>
    %c6 = arith.constant 6 : index
    %c0_72 = arith.constant 0 : index
    %c0_73 = arith.constant 0 : index
    %142 = vector.load %arg6[%c6, %c0_72, %c0_73] : memref<16x1x256xf32, #tpu.memory_space<vmem>>, vector<1x1x256xf32>
    %143 = vector.shape_cast %142 : vector<1x1x256xf32> to vector<1x256xf32>
    %144 = vector.broadcast %143 : vector<1x256xf32> to vector<2x256xf32>
    %145 = arith.addf %141, %144 : vector<2x256xf32>
    %146 = math.tanh %145 : vector<2x256xf32>
    %147 = arith.truncf %146 : vector<2x256xf32> to vector<2x256xbf16>
    %cst_74 = arith.constant dense<0.000000e+00> : vector<2x128xf32>
    %148 = tpu.matmul %147, %1, %cst_74 {dimension_numbers = #tpu.dot_dimension_numbers<[1], [0], [0], [1], [0, 0, 1, 1], [], []>} : vector<2x256xbf16>, vector<256x128xbf16>, vector<2x128xf32> -> vector<2x128xf32>
    %149 = arith.addf %148, %4 : vector<2x128xf32>
    %cst_75 = arith.constant 1.14227653 : f32
    %150 = vector.broadcast %cst_75 : f32 to vector<2x128xf32>
    %151 = arith.mulf %150, %139 : vector<2x128xf32>
    %cst_76 = arith.constant 0.319930822 : f32
    %152 = vector.broadcast %cst_76 : f32 to vector<2x128xf32>
    %153 = arith.mulf %152, %149 : vector<2x128xf32>
    %154 = arith.subf %151, %153 : vector<2x128xf32>
    %c6_77 = arith.constant 6 : index
    %c0_78 = arith.constant 0 : index
    %c0_79 = arith.constant 0 : index
    %155 = vector.load %arg3[%c6_77, %c0_78, %c0_79] : memref<16x2x128xf32, #tpu.memory_space<vmem>>, vector<1x2x128xf32>
    %156 = vector.shape_cast %155 : vector<1x2x128xf32> to vector<2x128xf32>
    %cst_80 = arith.constant 0.224966601 : f32
    %157 = vector.broadcast %cst_80 : f32 to vector<2x128xf32>
    %158 = arith.mulf %157, %156 : vector<2x128xf32>
    %159 = arith.addf %154, %158 : vector<2x128xf32>
    %160 = arith.mulf %5, %159 : vector<2x128xf32>
    %161 = arith.addf %160, %6 : vector<2x128xf32>
    %162 = arith.truncf %161 : vector<2x128xf32> to vector<2x128xbf16>
    %cst_81 = arith.constant dense<0.000000e+00> : vector<2x256xf32>
    %163 = tpu.matmul %162, %0, %cst_81 {dimension_numbers = #tpu.dot_dimension_numbers<[1], [0], [0], [1], [0, 0, 1, 1], [], []>} : vector<2x128xbf16>, vector<128x256xbf16>, vector<2x256xf32> -> vector<2x256xf32>
    %c7 = arith.constant 7 : index
    %c0_82 = arith.constant 0 : index
    %c0_83 = arith.constant 0 : index
    %164 = vector.load %arg6[%c7, %c0_82, %c0_83] : memref<16x1x256xf32, #tpu.memory_space<vmem>>, vector<1x1x256xf32>
    %165 = vector.shape_cast %164 : vector<1x1x256xf32> to vector<1x256xf32>
    %166 = vector.broadcast %165 : vector<1x256xf32> to vector<2x256xf32>
    %167 = arith.addf %163, %166 : vector<2x256xf32>
    %168 = math.tanh %167 : vector<2x256xf32>
    %169 = arith.truncf %168 : vector<2x256xf32> to vector<2x256xbf16>
    %cst_84 = arith.constant dense<0.000000e+00> : vector<2x128xf32>
    %170 = tpu.matmul %169, %1, %cst_84 {dimension_numbers = #tpu.dot_dimension_numbers<[1], [0], [0], [1], [0, 0, 1, 1], [], []>} : vector<2x256xbf16>, vector<256x128xbf16>, vector<2x128xf32> -> vector<2x128xf32>
    %171 = arith.addf %170, %4 : vector<2x128xf32>
    %cst_85 = arith.constant 1.11507678 : f32
    %172 = vector.broadcast %cst_85 : f32 to vector<2x128xf32>
    %173 = arith.mulf %172, %161 : vector<2x128xf32>
    %cst_86 = arith.constant 0.281133682 : f32
    %174 = vector.broadcast %cst_86 : f32 to vector<2x128xf32>
    %175 = arith.mulf %174, %171 : vector<2x128xf32>
    %176 = arith.subf %173, %175 : vector<2x128xf32>
    %c7_87 = arith.constant 7 : index
    %c0_88 = arith.constant 0 : index
    %c0_89 = arith.constant 0 : index
    %177 = vector.load %arg3[%c7_87, %c0_88, %c0_89] : memref<16x2x128xf32, #tpu.memory_space<vmem>>, vector<1x2x128xf32>
    %178 = vector.shape_cast %177 : vector<1x2x128xf32> to vector<2x128xf32>
    %cst_90 = arith.constant 0.202706784 : f32
    %179 = vector.broadcast %cst_90 : f32 to vector<2x128xf32>
    %180 = arith.mulf %179, %178 : vector<2x128xf32>
    %181 = arith.addf %176, %180 : vector<2x128xf32>
    %182 = arith.mulf %5, %181 : vector<2x128xf32>
    %183 = arith.addf %182, %6 : vector<2x128xf32>
    %184 = arith.truncf %183 : vector<2x128xf32> to vector<2x128xbf16>
    %cst_91 = arith.constant dense<0.000000e+00> : vector<2x256xf32>
    %185 = tpu.matmul %184, %0, %cst_91 {dimension_numbers = #tpu.dot_dimension_numbers<[1], [0], [0], [1], [0, 0, 1, 1], [], []>} : vector<2x128xbf16>, vector<128x256xbf16>, vector<2x256xf32> -> vector<2x256xf32>
    %c8 = arith.constant 8 : index
    %c0_92 = arith.constant 0 : index
    %c0_93 = arith.constant 0 : index
    %186 = vector.load %arg6[%c8, %c0_92, %c0_93] : memref<16x1x256xf32, #tpu.memory_space<vmem>>, vector<1x1x256xf32>
    %187 = vector.shape_cast %186 : vector<1x1x256xf32> to vector<1x256xf32>
    %188 = vector.broadcast %187 : vector<1x256xf32> to vector<2x256xf32>
    %189 = arith.addf %185, %188 : vector<2x256xf32>
    %190 = math.tanh %189 : vector<2x256xf32>
    %191 = arith.truncf %190 : vector<2x256xf32> to vector<2x256xbf16>
    %cst_94 = arith.constant dense<0.000000e+00> : vector<2x128xf32>
    %192 = tpu.matmul %191, %1, %cst_94 {dimension_numbers = #tpu.dot_dimension_numbers<[1], [0], [0], [1], [0, 0, 1, 1], [], []>} : vector<2x256xbf16>, vector<256x128xbf16>, vector<2x128xf32> -> vector<2x128xf32>
    %193 = arith.addf %192, %4 : vector<2x128xf32>
    %cst_95 = arith.constant 1.09372234 : f32
    %194 = vector.broadcast %cst_95 : f32 to vector<2x128xf32>
    %195 = arith.mulf %194, %183 : vector<2x128xf32>
    %cst_96 = arith.constant 0.252181351 : f32
    %196 = vector.broadcast %cst_96 : f32 to vector<2x128xf32>
    %197 = arith.mulf %196, %193 : vector<2x128xf32>
    %198 = arith.subf %195, %197 : vector<2x128xf32>
    %c8_97 = arith.constant 8 : index
    %c0_98 = arith.constant 0 : index
    %c0_99 = arith.constant 0 : index
    %199 = vector.load %arg3[%c8_97, %c0_98, %c0_99] : memref<16x2x128xf32, #tpu.memory_space<vmem>>, vector<1x2x128xf32>
    %200 = vector.shape_cast %199 : vector<1x2x128xf32> to vector<2x128xf32>
    %cst_100 = arith.constant 0.182094231 : f32
    %201 = vector.broadcast %cst_100 : f32 to vector<2x128xf32>
    %202 = arith.mulf %201, %200 : vector<2x128xf32>
    %203 = arith.addf %198, %202 : vector<2x128xf32>
    %204 = arith.mulf %5, %203 : vector<2x128xf32>
    %205 = arith.addf %204, %6 : vector<2x128xf32>
    %206 = arith.truncf %205 : vector<2x128xf32> to vector<2x128xbf16>
    %cst_101 = arith.constant dense<0.000000e+00> : vector<2x256xf32>
    %207 = tpu.matmul %206, %0, %cst_101 {dimension_numbers = #tpu.dot_dimension_numbers<[1], [0], [0], [1], [0, 0, 1, 1], [], []>} : vector<2x128xbf16>, vector<128x256xbf16>, vector<2x256xf32> -> vector<2x256xf32>
    %c9 = arith.constant 9 : index
    %c0_102 = arith.constant 0 : index
    %c0_103 = arith.constant 0 : index
    %208 = vector.load %arg6[%c9, %c0_102, %c0_103] : memref<16x1x256xf32, #tpu.memory_space<vmem>>, vector<1x1x256xf32>
    %209 = vector.shape_cast %208 : vector<1x1x256xf32> to vector<1x256xf32>
    %210 = vector.broadcast %209 : vector<1x256xf32> to vector<2x256xf32>
    %211 = arith.addf %207, %210 : vector<2x256xf32>
    %212 = math.tanh %211 : vector<2x256xf32>
    %213 = arith.truncf %212 : vector<2x256xf32> to vector<2x256xbf16>
    %cst_104 = arith.constant dense<0.000000e+00> : vector<2x128xf32>
    %214 = tpu.matmul %213, %1, %cst_104 {dimension_numbers = #tpu.dot_dimension_numbers<[1], [0], [0], [1], [0, 0, 1, 1], [], []>} : vector<2x256xbf16>, vector<256x128xbf16>, vector<2x128xf32> -> vector<2x128xf32>
    %215 = arith.addf %214, %4 : vector<2x128xf32>
    %cst_105 = arith.constant 1.07621276 : f32
    %216 = vector.broadcast %cst_105 : f32 to vector<2x128xf32>
    %217 = arith.mulf %216, %205 : vector<2x128xf32>
    %cst_106 = arith.constant 0.22983025 : f32
    %218 = vector.broadcast %cst_106 : f32 to vector<2x128xf32>
    %219 = arith.mulf %218, %215 : vector<2x128xf32>
    %220 = arith.subf %217, %219 : vector<2x128xf32>
    %c9_107 = arith.constant 9 : index
    %c0_108 = arith.constant 0 : index
    %c0_109 = arith.constant 0 : index
    %221 = vector.load %arg3[%c9_107, %c0_108, %c0_109] : memref<16x2x128xf32, #tpu.memory_space<vmem>>, vector<1x2x128xf32>
    %222 = vector.shape_cast %221 : vector<1x2x128xf32> to vector<2x128xf32>
    %cst_110 = arith.constant 0.162336096 : f32
    %223 = vector.broadcast %cst_110 : f32 to vector<2x128xf32>
    %224 = arith.mulf %223, %222 : vector<2x128xf32>
    %225 = arith.addf %220, %224 : vector<2x128xf32>
    %226 = arith.mulf %5, %225 : vector<2x128xf32>
    %227 = arith.addf %226, %6 : vector<2x128xf32>
    %228 = arith.truncf %227 : vector<2x128xf32> to vector<2x128xbf16>
    %cst_111 = arith.constant dense<0.000000e+00> : vector<2x256xf32>
    %229 = tpu.matmul %228, %0, %cst_111 {dimension_numbers = #tpu.dot_dimension_numbers<[1], [0], [0], [1], [0, 0, 1, 1], [], []>} : vector<2x128xbf16>, vector<128x256xbf16>, vector<2x256xf32> -> vector<2x256xf32>
    %c10 = arith.constant 10 : index
    %c0_112 = arith.constant 0 : index
    %c0_113 = arith.constant 0 : index
    %230 = vector.load %arg6[%c10, %c0_112, %c0_113] : memref<16x1x256xf32, #tpu.memory_space<vmem>>, vector<1x1x256xf32>
    %231 = vector.shape_cast %230 : vector<1x1x256xf32> to vector<1x256xf32>
    %232 = vector.broadcast %231 : vector<1x256xf32> to vector<2x256xf32>
    %233 = arith.addf %229, %232 : vector<2x256xf32>
    %234 = math.tanh %233 : vector<2x256xf32>
    %235 = arith.truncf %234 : vector<2x256xf32> to vector<2x256xbf16>
    %cst_114 = arith.constant dense<0.000000e+00> : vector<2x128xf32>
    %236 = tpu.matmul %235, %1, %cst_114 {dimension_numbers = #tpu.dot_dimension_numbers<[1], [0], [0], [1], [0, 0, 1, 1], [], []>} : vector<2x256xbf16>, vector<256x128xbf16>, vector<2x128xf32> -> vector<2x128xf32>
    %237 = arith.addf %236, %4 : vector<2x128xf32>
    %cst_115 = arith.constant 1.06133735 : f32
    %238 = vector.broadcast %cst_115 : f32 to vector<2x128xf32>
    %239 = arith.mulf %238, %227 : vector<2x128xf32>
    %cst_116 = arith.constant 0.211998448 : f32
    %240 = vector.broadcast %cst_116 : f32 to vector<2x128xf32>
    %241 = arith.mulf %240, %237 : vector<2x128xf32>
    %242 = arith.subf %239, %241 : vector<2x128xf32>
    %c10_117 = arith.constant 10 : index
    %c0_118 = arith.constant 0 : index
    %c0_119 = arith.constant 0 : index
    %243 = vector.load %arg3[%c10_117, %c0_118, %c0_119] : memref<16x2x128xf32, #tpu.memory_space<vmem>>, vector<1x2x128xf32>
    %244 = vector.shape_cast %243 : vector<1x2x128xf32> to vector<2x128xf32>
    %cst_120 = arith.constant 0.142735407 : f32
    %245 = vector.broadcast %cst_120 : f32 to vector<2x128xf32>
    %246 = arith.mulf %245, %244 : vector<2x128xf32>
    %247 = arith.addf %242, %246 : vector<2x128xf32>
    %248 = arith.mulf %5, %247 : vector<2x128xf32>
    %249 = arith.addf %248, %6 : vector<2x128xf32>
    %250 = arith.truncf %249 : vector<2x128xf32> to vector<2x128xbf16>
    %cst_121 = arith.constant dense<0.000000e+00> : vector<2x256xf32>
    %251 = tpu.matmul %250, %0, %cst_121 {dimension_numbers = #tpu.dot_dimension_numbers<[1], [0], [0], [1], [0, 0, 1, 1], [], []>} : vector<2x128xbf16>, vector<128x256xbf16>, vector<2x256xf32> -> vector<2x256xf32>
    %c11 = arith.constant 11 : index
    %c0_122 = arith.constant 0 : index
    %c0_123 = arith.constant 0 : index
    %252 = vector.load %arg6[%c11, %c0_122, %c0_123] : memref<16x1x256xf32, #tpu.memory_space<vmem>>, vector<1x1x256xf32>
    %253 = vector.shape_cast %252 : vector<1x1x256xf32> to vector<1x256xf32>
    %254 = vector.broadcast %253 : vector<1x256xf32> to vector<2x256xf32>
    %255 = arith.addf %251, %254 : vector<2x256xf32>
    %256 = math.tanh %255 : vector<2x256xf32>
    %257 = arith.truncf %256 : vector<2x256xf32> to vector<2x256xbf16>
    %cst_124 = arith.constant dense<0.000000e+00> : vector<2x128xf32>
    %258 = tpu.matmul %257, %1, %cst_124 {dimension_numbers = #tpu.dot_dimension_numbers<[1], [0], [0], [1], [0, 0, 1, 1], [], []>} : vector<2x256xbf16>, vector<256x128xbf16>, vector<2x128xf32> -> vector<2x128xf32>
    %259 = arith.addf %258, %4 : vector<2x128xf32>
    %cst_125 = arith.constant 1.04831409 : f32
    %260 = vector.broadcast %cst_125 : f32 to vector<2x128xf32>
    %261 = arith.mulf %260, %249 : vector<2x128xf32>
    %cst_126 = arith.constant 0.197157308 : f32
    %262 = vector.broadcast %cst_126 : f32 to vector<2x128xf32>
    %263 = arith.mulf %262, %259 : vector<2x128xf32>
    %264 = arith.subf %261, %263 : vector<2x128xf32>
    %c11_127 = arith.constant 11 : index
    %c0_128 = arith.constant 0 : index
    %c0_129 = arith.constant 0 : index
    %265 = vector.load %arg3[%c11_127, %c0_128, %c0_129] : memref<16x2x128xf32, #tpu.memory_space<vmem>>, vector<1x2x128xf32>
    %266 = vector.shape_cast %265 : vector<1x2x128xf32> to vector<2x128xf32>
    %cst_130 = arith.constant 0.122567743 : f32
    %267 = vector.broadcast %cst_130 : f32 to vector<2x128xf32>
    %268 = arith.mulf %267, %266 : vector<2x128xf32>
    %269 = arith.addf %264, %268 : vector<2x128xf32>
    %270 = arith.mulf %5, %269 : vector<2x128xf32>
    %271 = arith.addf %270, %6 : vector<2x128xf32>
    %272 = arith.truncf %271 : vector<2x128xf32> to vector<2x128xbf16>
    %cst_131 = arith.constant dense<0.000000e+00> : vector<2x256xf32>
    %273 = tpu.matmul %272, %0, %cst_131 {dimension_numbers = #tpu.dot_dimension_numbers<[1], [0], [0], [1], [0, 0, 1, 1], [], []>} : vector<2x128xbf16>, vector<128x256xbf16>, vector<2x256xf32> -> vector<2x256xf32>
    %c12 = arith.constant 12 : index
    %c0_132 = arith.constant 0 : index
    %c0_133 = arith.constant 0 : index
    %274 = vector.load %arg6[%c12, %c0_132, %c0_133] : memref<16x1x256xf32, #tpu.memory_space<vmem>>, vector<1x1x256xf32>
    %275 = vector.shape_cast %274 : vector<1x1x256xf32> to vector<1x256xf32>
    %276 = vector.broadcast %275 : vector<1x256xf32> to vector<2x256xf32>
    %277 = arith.addf %273, %276 : vector<2x256xf32>
    %278 = math.tanh %277 : vector<2x256xf32>
    %279 = arith.truncf %278 : vector<2x256xf32> to vector<2x256xbf16>
    %cst_134 = arith.constant dense<0.000000e+00> : vector<2x128xf32>
    %280 = tpu.matmul %279, %1, %cst_134 {dimension_numbers = #tpu.dot_dimension_numbers<[1], [0], [0], [1], [0, 0, 1, 1], [], []>} : vector<2x256xbf16>, vector<256x128xbf16>, vector<2x128xf32> -> vector<2x128xf32>
    %281 = arith.addf %280, %4 : vector<2x128xf32>
    %cst_135 = arith.constant 1.03660905 : f32
    %282 = vector.broadcast %cst_135 : f32 to vector<2x128xf32>
    %283 = arith.mulf %282, %271 : vector<2x128xf32>
    %cst_136 = arith.constant 0.183887467 : f32
    %284 = vector.broadcast %cst_136 : f32 to vector<2x128xf32>
    %285 = arith.mulf %284, %281 : vector<2x128xf32>
    %286 = arith.subf %283, %285 : vector<2x128xf32>
    %c12_137 = arith.constant 12 : index
    %c0_138 = arith.constant 0 : index
    %c0_139 = arith.constant 0 : index
    %287 = vector.load %arg3[%c12_137, %c0_138, %c0_139] : memref<16x2x128xf32, #tpu.memory_space<vmem>>, vector<1x2x128xf32>
    %288 = vector.shape_cast %287 : vector<1x2x128xf32> to vector<2x128xf32>
    %cst_140 = arith.constant 0.100925252 : f32
    %289 = vector.broadcast %cst_140 : f32 to vector<2x128xf32>
    %290 = arith.mulf %289, %288 : vector<2x128xf32>
    %291 = arith.addf %286, %290 : vector<2x128xf32>
    %292 = arith.mulf %5, %291 : vector<2x128xf32>
    %293 = arith.addf %292, %6 : vector<2x128xf32>
    %294 = arith.truncf %293 : vector<2x128xf32> to vector<2x128xbf16>
    %cst_141 = arith.constant dense<0.000000e+00> : vector<2x256xf32>
    %295 = tpu.matmul %294, %0, %cst_141 {dimension_numbers = #tpu.dot_dimension_numbers<[1], [0], [0], [1], [0, 0, 1, 1], [], []>} : vector<2x128xbf16>, vector<128x256xbf16>, vector<2x256xf32> -> vector<2x256xf32>
    %c13 = arith.constant 13 : index
    %c0_142 = arith.constant 0 : index
    %c0_143 = arith.constant 0 : index
    %296 = vector.load %arg6[%c13, %c0_142, %c0_143] : memref<16x1x256xf32, #tpu.memory_space<vmem>>, vector<1x1x256xf32>
    %297 = vector.shape_cast %296 : vector<1x1x256xf32> to vector<1x256xf32>
    %298 = vector.broadcast %297 : vector<1x256xf32> to vector<2x256xf32>
    %299 = arith.addf %295, %298 : vector<2x256xf32>
    %300 = math.tanh %299 : vector<2x256xf32>
    %301 = arith.truncf %300 : vector<2x256xf32> to vector<2x256xbf16>
    %cst_144 = arith.constant dense<0.000000e+00> : vector<2x128xf32>
    %302 = tpu.matmul %301, %1, %cst_144 {dimension_numbers = #tpu.dot_dimension_numbers<[1], [0], [0], [1], [0, 0, 1, 1], [], []>} : vector<2x256xbf16>, vector<256x128xbf16>, vector<2x128xf32> -> vector<2x128xf32>
    %303 = arith.addf %302, %4 : vector<2x128xf32>
    %cst_145 = arith.constant 1.02583766 : f32
    %304 = vector.broadcast %cst_145 : f32 to vector<2x128xf32>
    %305 = arith.mulf %304, %293 : vector<2x128xf32>
    %cst_146 = arith.constant 0.170237198 : f32
    %306 = vector.broadcast %cst_146 : f32 to vector<2x128xf32>
    %307 = arith.mulf %306, %303 : vector<2x128xf32>
    %308 = arith.subf %305, %307 : vector<2x128xf32>
    %c13_147 = arith.constant 13 : index
    %c0_148 = arith.constant 0 : index
    %c0_149 = arith.constant 0 : index
    %309 = vector.load %arg3[%c13_147, %c0_148, %c0_149] : memref<16x2x128xf32, #tpu.memory_space<vmem>>, vector<1x2x128xf32>
    %310 = vector.shape_cast %309 : vector<1x2x128xf32> to vector<2x128xf32>
    %cst_150 = arith.constant 0.076423645 : f32
    %311 = vector.broadcast %cst_150 : f32 to vector<2x128xf32>
    %312 = arith.mulf %311, %310 : vector<2x128xf32>
    %313 = arith.addf %308, %312 : vector<2x128xf32>
    %314 = arith.mulf %5, %313 : vector<2x128xf32>
    %315 = arith.addf %314, %6 : vector<2x128xf32>
    %316 = arith.truncf %315 : vector<2x128xf32> to vector<2x128xbf16>
    %cst_151 = arith.constant dense<0.000000e+00> : vector<2x256xf32>
    %317 = tpu.matmul %316, %0, %cst_151 {dimension_numbers = #tpu.dot_dimension_numbers<[1], [0], [0], [1], [0, 0, 1, 1], [], []>} : vector<2x128xbf16>, vector<128x256xbf16>, vector<2x256xf32> -> vector<2x256xf32>
    %c14 = arith.constant 14 : index
    %c0_152 = arith.constant 0 : index
    %c0_153 = arith.constant 0 : index
    %318 = vector.load %arg6[%c14, %c0_152, %c0_153] : memref<16x1x256xf32, #tpu.memory_space<vmem>>, vector<1x1x256xf32>
    %319 = vector.shape_cast %318 : vector<1x1x256xf32> to vector<1x256xf32>
    %320 = vector.broadcast %319 : vector<1x256xf32> to vector<2x256xf32>
    %321 = arith.addf %317, %320 : vector<2x256xf32>
    %322 = math.tanh %321 : vector<2x256xf32>
    %323 = arith.truncf %322 : vector<2x256xf32> to vector<2x256xbf16>
    %cst_154 = arith.constant dense<0.000000e+00> : vector<2x128xf32>
    %324 = tpu.matmul %323, %1, %cst_154 {dimension_numbers = #tpu.dot_dimension_numbers<[1], [0], [0], [1], [0, 0, 1, 1], [], []>} : vector<2x256xbf16>, vector<256x128xbf16>, vector<2x128xf32> -> vector<2x128xf32>
    %325 = arith.addf %324, %4 : vector<2x128xf32>
    %cst_155 = arith.constant 1.01570857 : f32
    %326 = vector.broadcast %cst_155 : f32 to vector<2x128xf32>
    %327 = arith.mulf %326, %315 : vector<2x128xf32>
    %cst_156 = arith.constant 0.151761457 : f32
    %328 = vector.broadcast %cst_156 : f32 to vector<2x128xf32>
    %329 = arith.mulf %328, %325 : vector<2x128xf32>
    %330 = arith.subf %327, %329 : vector<2x128xf32>
    %c14_157 = arith.constant 14 : index
    %c0_158 = arith.constant 0 : index
    %c0_159 = arith.constant 0 : index
    %331 = vector.load %arg3[%c14_157, %c0_158, %c0_159] : memref<16x2x128xf32, #tpu.memory_space<vmem>>, vector<1x2x128xf32>
    %332 = vector.shape_cast %331 : vector<1x2x128xf32> to vector<2x128xf32>
    %cst_160 = arith.constant 0.0464550108 : f32
    %333 = vector.broadcast %cst_160 : f32 to vector<2x128xf32>
    %334 = arith.mulf %333, %332 : vector<2x128xf32>
    %335 = arith.addf %330, %334 : vector<2x128xf32>
    %336 = arith.mulf %5, %335 : vector<2x128xf32>
    %337 = arith.addf %336, %6 : vector<2x128xf32>
    %338 = arith.truncf %337 : vector<2x128xf32> to vector<2x128xbf16>
    %cst_161 = arith.constant dense<0.000000e+00> : vector<2x256xf32>
    %339 = tpu.matmul %338, %0, %cst_161 {dimension_numbers = #tpu.dot_dimension_numbers<[1], [0], [0], [1], [0, 0, 1, 1], [], []>} : vector<2x128xbf16>, vector<128x256xbf16>, vector<2x256xf32> -> vector<2x256xf32>
    %c15 = arith.constant 15 : index
    %c0_162 = arith.constant 0 : index
    %c0_163 = arith.constant 0 : index
    %340 = vector.load %arg6[%c15, %c0_162, %c0_163] : memref<16x1x256xf32, #tpu.memory_space<vmem>>, vector<1x1x256xf32>
    %341 = vector.shape_cast %340 : vector<1x1x256xf32> to vector<1x256xf32>
    %342 = vector.broadcast %341 : vector<1x256xf32> to vector<2x256xf32>
    %343 = arith.addf %339, %342 : vector<2x256xf32>
    %344 = math.tanh %343 : vector<2x256xf32>
    %345 = arith.truncf %344 : vector<2x256xf32> to vector<2x256xbf16>
    %cst_164 = arith.constant dense<0.000000e+00> : vector<2x128xf32>
    %346 = tpu.matmul %345, %1, %cst_164 {dimension_numbers = #tpu.dot_dimension_numbers<[1], [0], [0], [1], [0, 0, 1, 1], [], []>} : vector<2x256xbf16>, vector<256x128xbf16>, vector<2x128xf32> -> vector<2x128xf32>
    %347 = arith.addf %346, %4 : vector<2x128xf32>
    %cst_165 = arith.constant 1.00598717 : f32
    %348 = vector.broadcast %cst_165 : f32 to vector<2x128xf32>
    %349 = arith.mulf %348, %337 : vector<2x128xf32>
    %cst_166 = arith.constant 0.109591059 : f32
    %350 = vector.broadcast %cst_166 : f32 to vector<2x128xf32>
    %351 = arith.mulf %350, %347 : vector<2x128xf32>
    %352 = arith.subf %349, %351 : vector<2x128xf32>
    %353 = arith.mulf %5, %352 : vector<2x128xf32>
    %354 = arith.addf %353, %6 : vector<2x128xf32>
    %c0_167 = arith.constant 0 : index
    %c0_168 = arith.constant 0 : index
    %355 = vector.load %arg8[%c0_167, %c0_168] : memref<2x128xf32, #tpu.memory_space<vmem>>, vector<2x128xf32>
    tpu.vector_store %arg8[%c0_167, %c0_168], %354 {strides = array<i32>} : memref<2x128xf32, #tpu.memory_space<vmem>>, vector<2x128xf32>,
    return
  }
}

</mosaic_0001>

<llo_original>
// kernel: tpu_custom_call.1
$region0: #{tpu_custom_call.1}
  #allocation0 [shape = 'u32[]', space=smem, size = 0x4, offset = 0x4, fixed_abs, tag = 'smem constant byte address 0x4 - core index']
  #allocation1 [shape = 'u32[144,128]{1,0:T(1,128)}', space=vmem, size = 0x12000, scoped, tag = 'internal scratch']
  %s0 = inlined_call_operand.hbm [shape: f32[2,128], index: 0, kind: input, shape index: {}]
  %s1 = inlined_call_operand.vmem [shape: f32[2,128], index: 1, kind: input, shape index: {}]
  %s2 = inlined_call_operand.vmem [shape: f32[2,128], index: 2, kind: input, shape index: {}]
  %s3 = inlined_call_operand.hbm [shape: f32[16,2,128], index: 3, kind: input, shape index: {}]
  %s4 = inlined_call_operand.hbm [shape: bf16[128,256], index: 4, kind: input, shape index: {}]
  %s5 = inlined_call_operand.hbm [shape: bf16[256,128], index: 5, kind: input, shape index: {}]
  %s6 = inlined_call_operand.hbm [shape: f32[16,1,256], index: 6, kind: input, shape index: {}]
  %s7 = inlined_call_operand.vmem [shape: f32[1,128], index: 7, kind: input, shape index: {}]
  %s8 = inlined_call_operand.hbm [shape: f32[2,128], index: 8, kind: output, shape index: {}]
  %s9 = sld [smem:[#allocation0]]
  $region62: #{tpu_custom_call.1} parent=0
    _
  %s11 = ssub.s32 1, %s9
  %s12 = scalar_select 0, %s11, %s9
  $region1: #{tpu_custom_call.1} parent=0
    #allocation2 [shape = 'u8[1024]{0}', space=vmem, size = 0x400, scoped, tag = 'input window, operand 0, single buffered']
    #allocation3 [shape = 's32[1]{0}', space=sflag, size = 0x4, scoped, tag = 'scoped memory for tpu_custom_call.1']
    #allocation4 [shape = 's32[1]{0}', space=sflag, size = 0x4, scoped, tag = 'scoped memory for tpu_custom_call.1']
    #allocation5 [shape = 'u8[16384]{0}', space=vmem, size = 0x4000, scoped, tag = 'input window, operand 3, single buffered']
    #allocation6 [shape = 's32[1]{0}', space=sflag, size = 0x4, scoped, tag = 'scoped memory for tpu_custom_call.1']
    #allocation7 [shape = 'u8[65536]{0}', space=vmem, size = 0x10000, scoped, tag = 'input window, operand 4, single buffered']
    #allocation8 [shape = 'u8[65536]{0}', space=vmem, size = 0x10000, scoped, tag = 'input window, operand 5, single buffered']
    #allocation9 [shape = 's32[1]{0}', space=sflag, size = 0x4, scoped, tag = 'scoped memory for tpu_custom_call.1']
    #allocation10 [shape = 'u8[16384]{0}', space=vmem, size = 0x4000, scoped, tag = 'input window, operand 6, single buffered']
    #allocation11 [shape = 'u8[1024]{0}', space=vmem, size = 0x400, scoped, tag = 'output window, operand 0, single buffered']
    %13 = vsyncpa [#allocation3], 0
    %14 = vsyncpa [#allocation6], 0
    %15 = vsyncpa [#allocation9], 0
    %16 = vsyncpa [#allocation4], 0
    // Predicated region
    $region2: #{tpu_custom_call.1} parent=1 // pred_check
      _
    $region3: #{tpu_custom_call.1} parent=1 // pred_check_branch
      %18 = sbr.rel (0) target = $region5
    $region4: #{tpu_custom_call.1} parent=1 // pred_region
      %s20 = ssub.s32 32, 32
      %21 = vsyncadd [#allocation3], %s20
      %s23 = sshll.u32 [#allocation2], 4
      %s24 = int_to_ptr.vmem [resolvable:$true] %s23
      %26 = dma.hbm_to_vmem [thread:$0]  %s0, 32, %s24, [#allocation3]
    $region5: #{tpu_custom_call.1} parent=1 // pred_fallthru
      _
    // Predicated region
    $region6: #{tpu_custom_call.1} parent=1 // pred_check
      _
    $region7: #{tpu_custom_call.1} parent=1 // pred_check_branch
      %28 = sbr.rel (0) target = $region9
    $region8: #{tpu_custom_call.1} parent=1 // pred_region
      _
    $region9: #{tpu_custom_call.1} parent=1 // pred_fallthru
      _
    // Predicated region
    $region10: #{tpu_custom_call.1} parent=1 // pred_check
      _
    $region11: #{tpu_custom_call.1} parent=1 // pred_check_branch
      %30 = sbr.rel (0) target = $region13
    $region12: #{tpu_custom_call.1} parent=1 // pred_region
      _
    $region13: #{tpu_custom_call.1} parent=1 // pred_fallthru
      _
    // Predicated region
    $region14: #{tpu_custom_call.1} parent=1 // pred_check
      _
    $region15: #{tpu_custom_call.1} parent=1 // pred_check_branch
      %32 = sbr.rel (0) target = $region17
    $region16: #{tpu_custom_call.1} parent=1 // pred_region
      %s34 = ssub.s32 512, 512
      %35 = vsyncadd [#allocation6], %s34
      %s36 = sshll.u32 [#allocation5], 4
      %s37 = int_to_ptr.vmem [resolvable:$true] %s36
      %42 = dma.hbm_to_vmem [thread:$0]  %s3, 512, %s37, [#allocation6], 32, 32, 2
    $region17: #{tpu_custom_call.1} parent=1 // pred_fallthru
      _
    // Predicated region
    $region18: #{tpu_custom_call.1} parent=1 // pred_check
      _
    $region19: #{tpu_custom_call.1} parent=1 // pred_check_branch
      %44 = sbr.rel (0) target = $region21
    $region20: #{tpu_custom_call.1} parent=1 // pred_region
      %s46 = ssub.s32 2048, 2048
      %47 = vsyncadd [#allocation6], %s46
      %s48 = sshll.u32 [#allocation7], 4
      %s49 = int_to_ptr.vmem [resolvable:$true] %s48
      %54 = dma.hbm_to_vmem [thread:$0]  %s4, 2048, %s49, [#allocation6], 128, 128, 8
    $region21: #{tpu_custom_call.1} parent=1 // pred_fallthru
      _
    // Predicated region
    $region22: #{tpu_custom_call.1} parent=1 // pred_check
      _
    $region23: #{tpu_custom_call.1} parent=1 // pred_check_branch
      %56 = sbr.rel (0) target = $region25
    $region24: #{tpu_custom_call.1} parent=1 // pred_region
      %s58 = ssub.s32 2048, 2048
      %59 = vsyncadd [#allocation9], %s58
      %s60 = sshll.u32 [#allocation8], 4
      %s61 = int_to_ptr.vmem [resolvable:$true] %s60
      %66 = dma.hbm_to_vmem [thread:$0]  %s5, 2048, %s61, [#allocation9], 64, 64, 4
    $region25: #{tpu_custom_call.1} parent=1 // pred_fallthru
      _
    // Predicated region
    $region26: #{tpu_custom_call.1} parent=1 // pred_check
      _
    $region27: #{tpu_custom_call.1} parent=1 // pred_check_branch
      %68 = sbr.rel (0) target = $region29
    $region28: #{tpu_custom_call.1} parent=1 // pred_region
      %s70 = ssub.s32 512, 512
      %71 = vsyncadd [#allocation9], %s70
      %s72 = sshll.u32 [#allocation10], 4
      %s73 = int_to_ptr.vmem [resolvable:$true] %s72
      %78 = dma.hbm_to_vmem [thread:$0]  %s6, 512, %s73, [#allocation9], 32, 32, 2
    $region29: #{tpu_custom_call.1} parent=1 // pred_fallthru
      _
    // Predicated region
    $region30: #{tpu_custom_call.1} parent=1 // pred_check
      _
    $region31: #{tpu_custom_call.1} parent=1 // pred_check_branch
      %80 = sbr.rel (0) target = $region33
    $region32: #{tpu_custom_call.1} parent=1 // pred_region
      _
    $region33: #{tpu_custom_call.1} parent=1 // pred_fallthru
      _
    // Predicated region
    $region34: #{tpu_custom_call.1} parent=1 // pred_check
      _
    $region35: #{tpu_custom_call.1} parent=1 // pred_check_branch
      %82 = sbr.rel (0) target = $region37
    $region36: #{tpu_custom_call.1} parent=1 // pred_region
      %83 = dma.done [#allocation3], 32
    $region37: #{tpu_custom_call.1} parent=1 // pred_fallthru
      _
    // Predicated region
    $region38: #{tpu_custom_call.1} parent=1 // pred_check
      _
    $region39: #{tpu_custom_call.1} parent=1 // pred_check_branch
      %85 = sbr.rel (0) target = $region41
    $region40: #{tpu_custom_call.1} parent=1 // pred_region
      %86 = dma.done [#allocation6], 512
    $region41: #{tpu_custom_call.1} parent=1 // pred_fallthru
      _
    // Predicated region
    $region42: #{tpu_custom_call.1} parent=1 // pred_check
      _
    $region43: #{tpu_custom_call.1} parent=1 // pred_check_branch
      %88 = sbr.rel (0) target = $region45
    $region44: #{tpu_custom_call.1} parent=1 // pred_region
      %89 = dma.done [#allocation6], 2048
    $region45: #{tpu_custom_call.1} parent=1 // pred_fallthru
      _
    // Predicated region
    $region46: #{tpu_custom_call.1} parent=1 // pred_check
      _
    $region47: #{tpu_custom_call.1} parent=1 // pred_check_branch
      %91 = sbr.rel (0) target = $region49
    $region48: #{tpu_custom_call.1} parent=1 // pred_region
      %92 = dma.done [#allocation9], 2048
    $region49: #{tpu_custom_call.1} parent=1 // pred_fallthru
      _
    // Predicated region
    $region50: #{tpu_custom_call.1} parent=1 // pred_check
      _
    $region51: #{tpu_custom_call.1} parent=1 // pred_check_branch
      %94 = sbr.rel (0) target = $region53
    $region52: #{tpu_custom_call.1} parent=1 // pred_region
      %95 = dma.done [#allocation9], 512
    $region53: #{tpu_custom_call.1} parent=1 // pred_fallthru
      _
    %v97 = vld [vmem:[#allocation7] sm:$0xff]
    %v98 = vld [vmem:[#allocation7 + $0x8] sm:$0xff]
    %v99 = vld [vmem:[#allocation7 + $0x10] sm:$0xff]
    %v100 = vld [vmem:[#allocation7 + $0x18] sm:$0xff]
    %v101 = vld [vmem:[#allocation7 + $0x20] sm:$0xff]
    %v102 = vld [vmem:[#allocation7 + $0x28] sm:$0xff]
    %v103 = vld [vmem:[#allocation7 + $0x30] sm:$0xff]
    %v104 = vld [vmem:[#allocation7 + $0x38] sm:$0xff]
    %v105 = vld [vmem:[#allocation7 + $0x40] sm:$0xff]
    %v106 = vld [vmem:[#allocation7 + $0x48] sm:$0xff]
    %v107 = vld [vmem:[#allocation7 + $0x50] sm:$0xff]
    %v108 = vld [vmem:[#allocation7 + $0x58] sm:$0xff]
    %v109 = vld [vmem:[#allocation7 + $0x60] sm:$0xff]
    %v110 = vld [vmem:[#allocation7 + $0x68] sm:$0xff]
    %v111 = vld [vmem:[#allocation7 + $0x70] sm:$0xff]
    %v112 = vld [vmem:[#allocation7 + $0x78] sm:$0xff]
    %v113 = vld [vmem:[#allocation8] sm:$0xf]
    %v114 = vld [vmem:[#allocation8 + $0x4] sm:$0xf]
    %v115 = vld [vmem:[#allocation8 + $0x8] sm:$0xf]
    %v116 = vld [vmem:[#allocation8 + $0xc] sm:$0xf]
    %v117 = vld [vmem:[#allocation8 + $0x10] sm:$0xf]
    %v118 = vld [vmem:[#allocation8 + $0x14] sm:$0xf]
    %v119 = vld [vmem:[#allocation8 + $0x18] sm:$0xf]
    %v120 = vld [vmem:[#allocation8 + $0x1c] sm:$0xf]
    %v121 = vld [vmem:[#allocation8 + $0x20] sm:$0xf]
    %v122 = vld [vmem:[#allocation8 + $0x24] sm:$0xf]
    %v123 = vld [vmem:[#allocation8 + $0x28] sm:$0xf]
    %v124 = vld [vmem:[#allocation8 + $0x2c] sm:$0xf]
    %v125 = vld [vmem:[#allocation8 + $0x30] sm:$0xf]
    %v126 = vld [vmem:[#allocation8 + $0x34] sm:$0xf]
    %v127 = vld [vmem:[#allocation8 + $0x38] sm:$0xf]
    %v128 = vld [vmem:[#allocation8 + $0x3c] sm:$0xf]
    %v129 = vld [vmem:[#allocation8 + $0x40] sm:$0xf]
    %v130 = vld [vmem:[#allocation8 + $0x44] sm:$0xf]
    %v131 = vld [vmem:[#allocation8 + $0x48] sm:$0xf]
    %v132 = vld [vmem:[#allocation8 + $0x4c] sm:$0xf]
    %v133 = vld [vmem:[#allocation8 + $0x50] sm:$0xf]
    %v134 = vld [vmem:[#allocation8 + $0x54] sm:$0xf]
    %v135 = vld [vmem:[#allocation8 + $0x58] sm:$0xf]
    %v136 = vld [vmem:[#allocation8 + $0x5c] sm:$0xf]
    %v137 = vld [vmem:[#allocation8 + $0x60] sm:$0xf]
    %v138 = vld [vmem:[#allocation8 + $0x64] sm:$0xf]
    %v139 = vld [vmem:[#allocation8 + $0x68] sm:$0xf]
    %v140 = vld [vmem:[#allocation8 + $0x6c] sm:$0xf]
    %v141 = vld [vmem:[#allocation8 + $0x70] sm:$0xf]
    %v142 = vld [vmem:[#allocation8 + $0x74] sm:$0xf]
    %v143 = vld [vmem:[#allocation8 + $0x78] sm:$0xf]
    %v144 = vld [vmem:[#allocation8 + $0x7c] sm:$0xf]
    %v145 = vld [vmem:[%s7] sm:$0x1]
    %v147 = vlaneseq
    %v148 = vshrl.u32 %v147, 7
    %v149 = vsub.s32 0, %v148
    %v150 = vrot.slane %v145, %v149
    %v152 = vld [vmem:[%s2] sm:$0x3]
    %v153 = vld [vmem:[%s1] sm:$0x3]
    %v154 = vld [vmem:[#allocation2] sm:$0x3]
    %v155 = vpack.c.bf16 %v154, %v154
    %v156 = vld [vmem:[#allocation10] sm:$0x3]
    %v158 = vlaneseq
    %v159 = vshrl.u32 %v158, 7
    %v160 = vsub.s32 0, %v159
    %v161 = vrot.slane %v156, %v160
    %v162 = vlaneseq
    %v163 = vshrl.u32 %v162, 7
    %v164 = vsub.s32 1, %v163
    %v165 = vrot.slane %v156, %v164
    %v184 = vunpack.c.l.b16 %v97
    %v185 = vunpack.c.h.b16 %v97
    %v186 = vunpack.c.l.b16 %v98
    %v187 = vunpack.c.h.b16 %v98
    %v188 = vunpack.c.l.b16 %v99
    %v189 = vunpack.c.h.b16 %v99
    %v190 = vunpack.c.l.b16 %v100
    %v191 = vunpack.c.h.b16 %v100
    %v192 = vunpack.c.l.b16 %v101
    %v193 = vunpack.c.h.b16 %v101
    %v194 = vunpack.c.l.b16 %v102
    %v195 = vunpack.c.h.b16 %v102
    %v196 = vunpack.c.l.b16 %v103
    %v197 = vunpack.c.h.b16 %v103
    %v198 = vunpack.c.l.b16 %v104
    %v199 = vunpack.c.h.b16 %v104
    %v200 = vunpack.c.l.b16 %v105
    %v201 = vunpack.c.h.b16 %v105
    %v202 = vunpack.c.l.b16 %v106
    %v203 = vunpack.c.h.b16 %v106
    %v204 = vunpack.c.l.b16 %v107
    %v205 = vunpack.c.h.b16 %v107
    %v206 = vunpack.c.l.b16 %v108
    %v207 = vunpack.c.h.b16 %v108
    %v208 = vunpack.c.l.b16 %v109
    %v209 = vunpack.c.h.b16 %v109
    %v210 = vunpack.c.l.b16 %v110
    %v211 = vunpack.c.h.b16 %v110
    %v212 = vunpack.c.l.b16 %v111
    %v213 = vunpack.c.h.b16 %v111
    %v214 = vunpack.c.l.b16 %v112
    %v215 = vunpack.c.h.b16 %v112
    %v216 = vpack.c.b16 %v186, %v184
    %v217 = vpack.c.b16 %v187, %v185
    %v218 = vpack.c.b16 %v190, %v188
    %v219 = vpack.c.b16 %v191, %v189
    %v220 = vpack.c.b16 %v194, %v192
    %v221 = vpack.c.b16 %v195, %v193
    %v222 = vpack.c.b16 %v198, %v196
    %v223 = vpack.c.b16 %v199, %v197
    %v224 = vpack.c.b16 %v202, %v200
    %v225 = vpack.c.b16 %v203, %v201
    %v226 = vpack.c.b16 %v206, %v204
    %v227 = vpack.c.b16 %v207, %v205
    %v228 = vpack.c.b16 %v210, %v208
    %v229 = vpack.c.b16 %v211, %v209
    %v230 = vpack.c.b16 %v214, %v212
    %v231 = vpack.c.b16 %v215, %v213
    %248 = vmatprep.subr.bf16.mxu0 %v217
    %249 = vmatpush1.bf16.msra.mxu0 %v216
    %250 = vmatprep.subr.bf16.mxu0 %v219
    %251 = vmatpush1.bf16.msra.mxu0 %v218
    %252 = vmatprep.subr.bf16.mxu0 %v221
    %253 = vmatpush1.bf16.msra.mxu0 %v220
    %254 = vmatprep.subr.bf16.mxu0 %v223
    %255 = vmatpush1.bf16.msra.mxu0 %v222
    %256 = vmatprep.subr.bf16.mxu0 %v225
    %257 = vmatpush1.bf16.msra.mxu0 %v224
    %258 = vmatprep.subr.bf16.mxu0 %v227
    %259 = vmatpush1.bf16.msra.mxu0 %v226
    %260 = vmatprep.subr.bf16.mxu0 %v229
    %261 = vmatpush1.bf16.msra.mxu0 %v228
    %262 = vmatprep.subr.bf16.mxu0 %v231
    %263 = vmatpush1.bf16.msra.mxu0 %v230
    %264 = vmatprep.subr.bf16.mxu0 0
    %265 = vmatpush1.bf16.msra.mxu0 0
    %266 = vmatprep.subr.bf16.mxu0 0
    %267 = vmatpush1.bf16.msra.mxu0 0
    %268 = vmatprep.subr.bf16.mxu0 0
    %269 = vmatpush1.bf16.msra.mxu0 0
    %270 = vmatprep.subr.bf16.mxu0 0
    %271 = vmatpush1.bf16.msra.mxu0 0
    %272 = vmatprep.subr.bf16.mxu0 0
    %273 = vmatpush1.bf16.msra.mxu0 0
    %274 = vmatprep.subr.bf16.mxu0 0
    %275 = vmatpush1.bf16.msra.mxu0 0
    %276 = vmatprep.subr.bf16.mxu0 0
    %277 = vmatpush1.bf16.msra.mxu0 0
    %278 = vmatprep.subr.bf16.mxu0 0
    %279 = vmatpush1.bf16.msra.mxu0 0
    %280 = vmatprep.mubr.bf16.mxu0 0
    %281 = vmatmul.mubr.bf16.gmra.mrb[0].mxu0 %v155
    %v282 = vpop.f32.mrb[0].mxu0
    %v283 = vadd.f32 %v161, %v282
    %v284 = vpop.f32.mrb[0].mxu0
    %v285 = vadd.f32 %v165, %v284
    %v286 = vpop.f32.mrb[0].mxu0
    %v287 = vpop.f32.mrb[0].mxu0
    %288 = vdwg.mxu0
    %v289 = vtanh.pop %v283
    %v290 = vtanh.pop %v285
    %v291 = vpack.c.bf16 %v289, %v289
    %v292 = vpack.c.bf16 %v290, %v290
    %v325 = vunpack.c.l.b16 %v113
    %v326 = vunpack.c.l.b16 %v114
    %v327 = vunpack.c.l.b16 %v115
    %v328 = vunpack.c.l.b16 %v116
    %v329 = vunpack.c.l.b16 %v117
    %v330 = vunpack.c.l.b16 %v118
    %v331 = vunpack.c.l.b16 %v119
    %v332 = vunpack.c.l.b16 %v120
    %v333 = vunpack.c.l.b16 %v121
    %v334 = vunpack.c.l.b16 %v122
    %v335 = vunpack.c.l.b16 %v123
    %v336 = vunpack.c.l.b16 %v124
    %v337 = vunpack.c.l.b16 %v125
    %v338 = vunpack.c.l.b16 %v126
    %v339 = vunpack.c.l.b16 %v127
    %v340 = vunpack.c.l.b16 %v128
    %v341 = vunpack.c.l.b16 %v129
    %v342 = vunpack.c.l.b16 %v130
    %v343 = vunpack.c.l.b16 %v131
    %v344 = vunpack.c.l.b16 %v132
    %v345 = vunpack.c.l.b16 %v133
    %v346 = vunpack.c.l.b16 %v134
    %v347 = vunpack.c.l.b16 %v135
    %v348 = vunpack.c.l.b16 %v136
    %v349 = vunpack.c.l.b16 %v137
    %v350 = vunpack.c.l.b16 %v138
    %v351 = vunpack.c.l.b16 %v139
    %v352 = vunpack.c.l.b16 %v140
    %v353 = vunpack.c.l.b16 %v141
    %v354 = vunpack.c.l.b16 %v142
    %v355 = vunpack.c.l.b16 %v143
    %v356 = vunpack.c.l.b16 %v144
    %v357 = vpack.c.b16 %v326, %v325
    %v358 = vpack.c.b16 %v328, %v327
    %v359 = vpack.c.b16 %v330, %v329
    %v360 = vpack.c.b16 %v332, %v331
    %v361 = vpack.c.b16 %v334, %v333
    %v362 = vpack.c.b16 %v336, %v335
    %v363 = vpack.c.b16 %v338, %v337
    %v364 = vpack.c.b16 %v340, %v339
    %v365 = vpack.c.b16 %v342, %v341
    %v366 = vpack.c.b16 %v344, %v343
    %v367 = vpack.c.b16 %v346, %v345
    %v368 = vpack.c.b16 %v348, %v347
    %v369 = vpack.c.b16 %v350, %v349
    %v370 = vpack.c.b16 %v352, %v351
    %v371 = vpack.c.b16 %v354, %v353
    %v372 = vpack.c.b16 %v356, %v355
    %389 = vmatprep.subr.bf16.mxu0 0
    %390 = vmatpush1.bf16.msra.mxu0 %v357
    %391 = vmatprep.subr.bf16.mxu0 0
    %392 = vmatpush1.bf16.msra.mxu0 %v358
    %393 = vmatprep.subr.bf16.mxu0 0
    %394 = vmatpush1.bf16.msra.mxu0 %v359
    %395 = vmatprep.subr.bf16.mxu0 0
    %396 = vmatpush1.bf16.msra.mxu0 %v360
    %397 = vmatprep.subr.bf16.mxu0 0
    %398 = vmatpush1.bf16.msra.mxu0 %v361
    %399 = vmatprep.subr.bf16.mxu0 0
    %400 = vmatpush1.bf16.msra.mxu0 %v362
    %401 = vmatprep.subr.bf16.mxu0 0
    %402 = vmatpush1.bf16.msra.mxu0 %v363
    %403 = vmatprep.subr.bf16.mxu0 0
    %404 = vmatpush1.bf16.msra.mxu0 %v364
    %405 = vmatprep.subr.bf16.mxu0 0
    %406 = vmatpush1.bf16.msra.mxu0 %v365
    %407 = vmatprep.subr.bf16.mxu0 0
    %408 = vmatpush1.bf16.msra.mxu0 %v366
    %409 = vmatprep.subr.bf16.mxu0 0
    %410 = vmatpush1.bf16.msra.mxu0 %v367
    %411 = vmatprep.subr.bf16.mxu0 0
    %412 = vmatpush1.bf16.msra.mxu0 %v368
    %413 = vmatprep.subr.bf16.mxu0 0
    %414 = vmatpush1.bf16.msra.mxu0 %v369
    %415 = vmatprep.subr.bf16.mxu0 0
    %416 = vmatpush1.bf16.msra.mxu0 %v370
    %417 = vmatprep.subr.bf16.mxu0 0
    %418 = vmatpush1.bf16.msra.mxu0 %v371
    %419 = vmatprep.subr.bf16.mxu0 0
    %420 = vmatpush1.bf16.msra.mxu0 %v372
    %421 = vmatprep.mubr.bf16.mxu0 %v292
    %422 = vmatmul.mubr.bf16.gmra.mrb[0].mxu0 %v291
    %v423 = vpop.f32.mrb[0].mxu0
    %v424 = vadd.f32 %v150, %v423
    %v425 = vpop.f32.mrb[0].mxu0
    %v426 = vpop.f32.mrb[0].mxu0
    %v427 = vpop.f32.mrb[0].mxu0
    %428 = vdwg.mxu0
    %v429 = vmul.f32 %v154, 31.622776
    %v430 = vmul.f32 %v424, 31.591303
    %v431 = vsub.f32 %v429, %v430
    %v432 = vld [vmem:[#allocation5] sm:$0x3]
    %v433 = vmul.f32 %v432, 0.4973835
    %v434 = vadd.f32 %v431, %v433
    %v435 = vmul.f32 %v152, %v434
    %v436 = vadd.f32 %v435, %v153
    %v437 = vpack.c.bf16 %v436, %v436
    %s438 = scalar_lea.vmem [#allocation10], 2
    %v439 = vld [vmem:[%s438] sm:$0x3]
    %v441 = vlaneseq
    %v442 = vshrl.u32 %v441, 7
    %v443 = vsub.s32 0, %v442
    %v444 = vrot.slane %v439, %v443
    %v445 = vlaneseq
    %v446 = vshrl.u32 %v445, 7
    %v447 = vsub.s32 1, %v446
    %v448 = vrot.slane %v439, %v447
    %451 = vmatprep.subr.bf16.mxu0 %v217
    %452 = vmatpush1.bf16.msra.mxu0 %v216
    %453 = vmatprep.subr.bf16.mxu0 %v219
    %454 = vmatpush1.bf16.msra.mxu0 %v218
    %455 = vmatprep.subr.bf16.mxu0 %v221
    %456 = vmatpush1.bf16.msra.mxu0 %v220
    %457 = vmatprep.subr.bf16.mxu0 %v223
    %458 = vmatpush1.bf16.msra.mxu0 %v222
    %459 = vmatprep.subr.bf16.mxu0 %v225
    %460 = vmatpush1.bf16.msra.mxu0 %v224
    %461 = vmatprep.subr.bf16.mxu0 %v227
    %462 = vmatpush1.bf16.msra.mxu0 %v226
    %463 = vmatprep.subr.bf16.mxu0 %v229
    %464 = vmatpush1.bf16.msra.mxu0 %v228
    %465 = vmatprep.subr.bf16.mxu0 %v231
    %466 = vmatpush1.bf16.msra.mxu0 %v230
    %467 = vmatprep.subr.bf16.mxu0 0
    %468 = vmatpush1.bf16.msra.mxu0 0
    %469 = vmatprep.subr.bf16.mxu0 0
    %470 = vmatpush1.bf16.msra.mxu0 0
    %471 = vmatprep.subr.bf16.mxu0 0
    %472 = vmatpush1.bf16.msra.mxu0 0
    %473 = vmatprep.subr.bf16.mxu0 0
    %474 = vmatpush1.bf16.msra.mxu0 0
    %475 = vmatprep.subr.bf16.mxu0 0
    %476 = vmatpush1.bf16.msra.mxu0 0
    %477 = vmatprep.subr.bf16.mxu0 0
    %478 = vmatpush1.bf16.msra.mxu0 0
    %479 = vmatprep.subr.bf16.mxu0 0
    %480 = vmatpush1.bf16.msra.mxu0 0
    %481 = vmatprep.subr.bf16.mxu0 0
    %482 = vmatpush1.bf16.msra.mxu0 0
    %483 = vmatprep.mubr.bf16.mxu0 0
    %484 = vmatmul.mubr.bf16.gmra.mrb[0].mxu0 %v437
    %v485 = vpop.f32.mrb[0].mxu0
    %v486 = vadd.f32 %v444, %v485
    %v487 = vpop.f32.mrb[0].mxu0
    %v488 = vadd.f32 %v448, %v487
    %v489 = vpop.f32.mrb[0].mxu0
    %v490 = vpop.f32.mrb[0].mxu0
    %491 = vdwg.mxu0
    %v492 = vtanh.pop %v486
    %v493 = vtanh.pop %v488
    %v494 = vpack.c.bf16 %v492, %v492
    %v495 = vpack.c.bf16 %v493, %v493
    %496 = vmatprep.subr.bf16.mxu0 0
    %497 = vmatpush1.bf16.msra.mxu0 %v357
    %498 = vmatprep.subr.bf16.mxu0 0
    %499 = vmatpush1.bf16.msra.mxu0 %v358
    %500 = vmatprep.subr.bf16.mxu0 0
    %501 = vmatpush1.bf16.msra.mxu0 %v359
    %502 = vmatprep.subr.bf16.mxu0 0
    %503 = vmatpush1.bf16.msra.mxu0 %v360
    %504 = vmatprep.subr.bf16.mxu0 0
    %505 = vmatpush1.bf16.msra.mxu0 %v361
    %506 = vmatprep.subr.bf16.mxu0 0
    %507 = vmatpush1.bf16.msra.mxu0 %v362
    %508 = vmatprep.subr.bf16.mxu0 0
    %509 = vmatpush1.bf16.msra.mxu0 %v363
    %510 = vmatprep.subr.bf16.mxu0 0
    %511 = vmatpush1.bf16.msra.mxu0 %v364
    %512 = vmatprep.subr.bf16.mxu0 0
    %513 = vmatpush1.bf16.msra.mxu0 %v365
    %514 = vmatprep.subr.bf16.mxu0 0
    %515 = vmatpush1.bf16.msra.mxu0 %v366
    %516 = vmatprep.subr.bf16.mxu0 0
    %517 = vmatpush1.bf16.msra.mxu0 %v367
    %518 = vmatprep.subr.bf16.mxu0 0
    %519 = vmatpush1.bf16.msra.mxu0 %v368
    %520 = vmatprep.subr.bf16.mxu0 0
    %521 = vmatpush1.bf16.msra.mxu0 %v369
    %522 = vmatprep.subr.bf16.mxu0 0
    %523 = vmatpush1.bf16.msra.mxu0 %v370
    %524 = vmatprep.subr.bf16.mxu0 0
    %525 = vmatpush1.bf16.msra.mxu0 %v371
    %526 = vmatprep.subr.bf16.mxu0 0
    %527 = vmatpush1.bf16.msra.mxu0 %v372
    %528 = vmatprep.mubr.bf16.mxu0 %v495
    %529 = vmatmul.mubr.bf16.gmra.mrb[0].mxu0 %v494
    %v530 = vpop.f32.mrb[0].mxu0
    %v531 = vadd.f32 %v150, %v530
    %v532 = vpop.f32.mrb[0].mxu0
    %v533 = vpop.f32.mrb[0].mxu0
    %v534 = vpop.f32.mrb[0].mxu0
    %535 = vdwg.mxu0
    %v536 = vmul.f32 %v436, 1.9905216
    %v537 = vmul.f32 %v531, 1.495228
    %v538 = vsub.f32 %v536, %v537
    %s539 = scalar_lea.vmem [#allocation5], 2
    %v540 = vld [vmem:[%s539] sm:$0x3]
    %v541 = vmul.f32 %v540, 0.42616588
    %v542 = vadd.f32 %v538, %v541
    %v543 = vmul.f32 %v152, %v542
    %v544 = vadd.f32 %v543, %v153
    %v545 = vpack.c.bf16 %v544, %v544
    %s546 = scalar_lea.vmem [#allocation10], 4
    %v547 = vld [vmem:[%s546] sm:$0x3]
    %v549 = vlaneseq
    %v550 = vshrl.u32 %v549, 7
    %v551 = vsub.s32 0, %v550
    %v552 = vrot.slane %v547, %v551
    %v553 = vlaneseq
    %v554 = vshrl.u32 %v553, 7
    %v555 = vsub.s32 1, %v554
    %v556 = vrot.slane %v547, %v555
    %559 = vmatprep.subr.bf16.mxu0 %v217
    %560 = vmatpush1.bf16.msra.mxu0 %v216
    %561 = vmatprep.subr.bf16.mxu0 %v219
    %562 = vmatpush1.bf16.msra.mxu0 %v218
    %563 = vmatprep.subr.bf16.mxu0 %v221
    %564 = vmatpush1.bf16.msra.mxu0 %v220
    %565 = vmatprep.subr.bf16.mxu0 %v223
    %566 = vmatpush1.bf16.msra.mxu0 %v222
    %567 = vmatprep.subr.bf16.mxu0 %v225
    %568 = vmatpush1.bf16.msra.mxu0 %v224
    %569 = vmatprep.subr.bf16.mxu0 %v227
    %570 = vmatpush1.bf16.msra.mxu0 %v226
    %571 = vmatprep.subr.bf16.mxu0 %v229
    %572 = vmatpush1.bf16.msra.mxu0 %v228
    %573 = vmatprep.subr.bf16.mxu0 %v231
    %574 = vmatpush1.bf16.msra.mxu0 %v230
    %575 = vmatprep.subr.bf16.mxu0 0
    %576 = vmatpush1.bf16.msra.mxu0 0
    %577 = vmatprep.subr.bf16.mxu0 0
    %578 = vmatpush1.bf16.msra.mxu0 0
    %579 = vmatprep.subr.bf16.mxu0 0
    %580 = vmatpush1.bf16.msra.mxu0 0
    %581 = vmatprep.subr.bf16.mxu0 0
    %582 = vmatpush1.bf16.msra.mxu0 0
    %583 = vmatprep.subr.bf16.mxu0 0
    %584 = vmatpush1.bf16.msra.mxu0 0
    %585 = vmatprep.subr.bf16.mxu0 0
    %586 = vmatpush1.bf16.msra.mxu0 0
    %587 = vmatprep.subr.bf16.mxu0 0
    %588 = vmatpush1.bf16.msra.mxu0 0
    %589 = vmatprep.subr.bf16.mxu0 0
    %590 = vmatpush1.bf16.msra.mxu0 0
    %591 = vmatprep.mubr.bf16.mxu0 0
    %592 = vmatmul.mubr.bf16.gmra.mrb[0].mxu0 %v545
    %v593 = vpop.f32.mrb[0].mxu0
    %v594 = vadd.f32 %v552, %v593
    %v595 = vpop.f32.mrb[0].mxu0
    %v596 = vadd.f32 %v556, %v595
    %v597 = vpop.f32.mrb[0].mxu0
    %v598 = vpop.f32.mrb[0].mxu0
    %599 = vdwg.mxu0
    %v600 = vtanh.pop %v594
    %v601 = vtanh.pop %v596
    %v602 = vpack.c.bf16 %v600, %v600
    %v603 = vpack.c.bf16 %v601, %v601
    %604 = vmatprep.subr.bf16.mxu0 0
    %605 = vmatpush1.bf16.msra.mxu0 %v357
    %606 = vmatprep.subr.bf16.mxu0 0
    %607 = vmatpush1.bf16.msra.mxu0 %v358
    %608 = vmatprep.subr.bf16.mxu0 0
    %609 = vmatpush1.bf16.msra.mxu0 %v359
    %610 = vmatprep.subr.bf16.mxu0 0
    %611 = vmatpush1.bf16.msra.mxu0 %v360
    %612 = vmatprep.subr.bf16.mxu0 0
    %613 = vmatpush1.bf16.msra.mxu0 %v361
    %614 = vmatprep.subr.bf16.mxu0 0
    %615 = vmatpush1.bf16.msra.mxu0 %v362
    %616 = vmatprep.subr.bf16.mxu0 0
    %617 = vmatpush1.bf16.msra.mxu0 %v363
    %618 = vmatprep.subr.bf16.mxu0 0
    %619 = vmatpush1.bf16.msra.mxu0 %v364
    %620 = vmatprep.subr.bf16.mxu0 0
    %621 = vmatpush1.bf16.msra.mxu0 %v365
    %622 = vmatprep.subr.bf16.mxu0 0
    %623 = vmatpush1.bf16.msra.mxu0 %v366
    %624 = vmatprep.subr.bf16.mxu0 0
    %625 = vmatpush1.bf16.msra.mxu0 %v367
    %626 = vmatprep.subr.bf16.mxu0 0
    %627 = vmatpush1.bf16.msra.mxu0 %v368
    %628 = vmatprep.subr.bf16.mxu0 0
    %629 = vmatpush1.bf16.msra.mxu0 %v369
    %630 = vmatprep.subr.bf16.mxu0 0
    %631 = vmatpush1.bf16.msra.mxu0 %v370
    %632 = vmatprep.subr.bf16.mxu0 0
    %633 = vmatpush1.bf16.msra.mxu0 %v371
    %634 = vmatprep.subr.bf16.mxu0 0
    %635 = vmatpush1.bf16.msra.mxu0 %v372
    %636 = vmatprep.mubr.bf16.mxu0 %v603
    %637 = vmatmul.mubr.bf16.gmra.mrb[0].mxu0 %v602
    %v638 = vpop.f32.mrb[0].mxu0
    %v639 = vadd.f32 %v150, %v638
    %v640 = vpop.f32.mrb[0].mxu0
    %v641 = vpop.f32.mrb[0].mxu0
    %v642 = vpop.f32.mrb[0].mxu0
    %643 = vdwg.mxu0
    %v644 = vmul.f32 %v544, 1.4881407
    %v645 = vmul.f32 %v639, 0.8318964
    %v646 = vsub.f32 %v644, %v645
    %s647 = scalar_lea.vmem [#allocation5], 4
    %v648 = vld [vmem:[%s647] sm:$0x3]
    %v649 = vmul.f32 %v648, 0.36142462
    %v650 = vadd.f32 %v646, %v649
    %v651 = vmul.f32 %v152, %v650
    %v652 = vadd.f32 %v651, %v153
    %v653 = vpack.c.bf16 %v652, %v652
    %s654 = scalar_lea.vmem [#allocation10], 6
    %v655 = vld [vmem:[%s654] sm:$0x3]
    %v657 = vlaneseq
    %v658 = vshrl.u32 %v657, 7
    %v659 = vsub.s32 0, %v658
    %v660 = vrot.slane %v655, %v659
    %v661 = vlaneseq
    %v662 = vshrl.u32 %v661, 7
    %v663 = vsub.s32 1, %v662
    %v664 = vrot.slane %v655, %v663
    %667 = vmatprep.subr.bf16.mxu0 %v217
    %668 = vmatpush1.bf16.msra.mxu0 %v216
    %669 = vmatprep.subr.bf16.mxu0 %v219
    %670 = vmatpush1.bf16.msra.mxu0 %v218
    %671 = vmatprep.subr.bf16.mxu0 %v221
    %672 = vmatpush1.bf16.msra.mxu0 %v220
    %673 = vmatprep.subr.bf16.mxu0 %v223
    %674 = vmatpush1.bf16.msra.mxu0 %v222
    %675 = vmatprep.subr.bf16.mxu0 %v225
    %676 = vmatpush1.bf16.msra.mxu0 %v224
    %677 = vmatprep.subr.bf16.mxu0 %v227
    %678 = vmatpush1.bf16.msra.mxu0 %v226
    %679 = vmatprep.subr.bf16.mxu0 %v229
    %680 = vmatpush1.bf16.msra.mxu0 %v228
    %681 = vmatprep.subr.bf16.mxu0 %v231
    %682 = vmatpush1.bf16.msra.mxu0 %v230
    %683 = vmatprep.subr.bf16.mxu0 0
    %684 = vmatpush1.bf16.msra.mxu0 0
    %685 = vmatprep.subr.bf16.mxu0 0
    %686 = vmatpush1.bf16.msra.mxu0 0
    %687 = vmatprep.subr.bf16.mxu0 0
    %688 = vmatpush1.bf16.msra.mxu0 0
    %689 = vmatprep.subr.bf16.mxu0 0
    %690 = vmatpush1.bf16.msra.mxu0 0
    %691 = vmatprep.subr.bf16.mxu0 0
    %692 = vmatpush1.bf16.msra.mxu0 0
    %693 = vmatprep.subr.bf16.mxu0 0
    %694 = vmatpush1.bf16.msra.mxu0 0
    %695 = vmatprep.subr.bf16.mxu0 0
    %696 = vmatpush1.bf16.msra.mxu0 0
    %697 = vmatprep.subr.bf16.mxu0 0
    %698 = vmatpush1.bf16.msra.mxu0 0
    %699 = vmatprep.mubr.bf16.mxu0 0
    %700 = vmatmul.mubr.bf16.gmra.mrb[0].mxu0 %v653
    %v701 = vpop.f32.mrb[0].mxu0
    %v702 = vadd.f32 %v660, %v701
    %v703 = vpop.f32.mrb[0].mxu0
    %v704 = vadd.f32 %v664, %v703
    %v705 = vpop.f32.mrb[0].mxu0
    %v706 = vpop.f32.mrb[0].mxu0
    %707 = vdwg.mxu0
    %v708 = vtanh.pop %v702
    %v709 = vtanh.pop %v704
    %v710 = vpack.c.bf16 %v708, %v708
    %v711 = vpack.c.bf16 %v709, %v709
    %712 = vmatprep.subr.bf16.mxu0 0
    %713 = vmatpush1.bf16.msra.mxu0 %v357
    %714 = vmatprep.subr.bf16.mxu0 0
    %715 = vmatpush1.bf16.msra.mxu0 %v358
    %716 = vmatprep.subr.bf16.mxu0 0
    %717 = vmatpush1.bf16.msra.mxu0 %v359
    %718 = vmatprep.subr.bf16.mxu0 0
    %719 = vmatpush1.bf16.msra.mxu0 %v360
    %720 = vmatprep.subr.bf16.mxu0 0
    %721 = vmatpush1.bf16.msra.mxu0 %v361
    %722 = vmatprep.subr.bf16.mxu0 0
    %723 = vmatpush1.bf16.msra.mxu0 %v362
    %724 = vmatprep.subr.bf16.mxu0 0
    %725 = vmatpush1.bf16.msra.mxu0 %v363
    %726 = vmatprep.subr.bf16.mxu0 0
    %727 = vmatpush1.bf16.msra.mxu0 %v364
    %728 = vmatprep.subr.bf16.mxu0 0
    %729 = vmatpush1.bf16.msra.mxu0 %v365
    %730 = vmatprep.subr.bf16.mxu0 0
    %731 = vmatpush1.bf16.msra.mxu0 %v366
    %732 = vmatprep.subr.bf16.mxu0 0
    %733 = vmatpush1.bf16.msra.mxu0 %v367
    %734 = vmatprep.subr.bf16.mxu0 0
    %735 = vmatpush1.bf16.msra.mxu0 %v368
    %736 = vmatprep.subr.bf16.mxu0 0
    %737 = vmatpush1.bf16.msra.mxu0 %v369
    %738 = vmatprep.subr.bf16.mxu0 0
    %739 = vmatpush1.bf16.msra.mxu0 %v370
    %740 = vmatprep.subr.bf16.mxu0 0
    %741 = vmatpush1.bf16.msra.mxu0 %v371
    %742 = vmatprep.subr.bf16.mxu0 0
    %743 = vmatpush1.bf16.msra.mxu0 %v372
    %744 = vmatprep.mubr.bf16.mxu0 %v711
    %745 = vmatmul.mubr.bf16.gmra.mrb[0].mxu0 %v710
    %v746 = vpop.f32.mrb[0].mxu0
    %v747 = vadd.f32 %v150, %v746
    %v748 = vpop.f32.mrb[0].mxu0
    %v749 = vpop.f32.mrb[0].mxu0
    %v750 = vpop.f32.mrb[0].mxu0
    %751 = vdwg.mxu0
    %v752 = vmul.f32 %v652, 1.3185421
    %v753 = vmul.f32 %v747, 0.5849239
    %v754 = vsub.f32 %v752, %v753
    %s755 = scalar_lea.vmem [#allocation5], 6
    %v756 = vld [vmem:[%s755] sm:$0x3]
    %v757 = vmul.f32 %v756, 0.3148084
    %v758 = vadd.f32 %v754, %v757
    %v759 = vmul.f32 %v152, %v758
    %v760 = vadd.f32 %v759, %v153
    %v761 = vpack.c.bf16 %v760, %v760
    %s762 = scalar_lea.vmem [#allocation10], 8
    %v763 = vld [vmem:[%s762] sm:$0x3]
    %v765 = vlaneseq
    %v766 = vshrl.u32 %v765, 7
    %v767 = vsub.s32 0, %v766
    %v768 = vrot.slane %v763, %v767
    %v769 = vlaneseq
    %v770 = vshrl.u32 %v769, 7
    %v771 = vsub.s32 1, %v770
    %v772 = vrot.slane %v763, %v771
    %775 = vmatprep.subr.bf16.mxu0 %v217
    %776 = vmatpush1.bf16.msra.mxu0 %v216
    %777 = vmatprep.subr.bf16.mxu0 %v219
    %778 = vmatpush1.bf16.msra.mxu0 %v218
    %779 = vmatprep.subr.bf16.mxu0 %v221
    %780 = vmatpush1.bf16.msra.mxu0 %v220
    %781 = vmatprep.subr.bf16.mxu0 %v223
    %782 = vmatpush1.bf16.msra.mxu0 %v222
    %783 = vmatprep.subr.bf16.mxu0 %v225
    %784 = vmatpush1.bf16.msra.mxu0 %v224
    %785 = vmatprep.subr.bf16.mxu0 %v227
    %786 = vmatpush1.bf16.msra.mxu0 %v226
    %787 = vmatprep.subr.bf16.mxu0 %v229
    %788 = vmatpush1.bf16.msra.mxu0 %v228
    %789 = vmatprep.subr.bf16.mxu0 %v231
    %790 = vmatpush1.bf16.msra.mxu0 %v230
    %791 = vmatprep.subr.bf16.mxu0 0
    %792 = vmatpush1.bf16.msra.mxu0 0
    %793 = vmatprep.subr.bf16.mxu0 0
    %794 = vmatpush1.bf16.msra.mxu0 0
    %795 = vmatprep.subr.bf16.mxu0 0
    %796 = vmatpush1.bf16.msra.mxu0 0
    %797 = vmatprep.subr.bf16.mxu0 0
    %798 = vmatpush1.bf16.msra.mxu0 0
    %799 = vmatprep.subr.bf16.mxu0 0
    %800 = vmatpush1.bf16.msra.mxu0 0
    %801 = vmatprep.subr.bf16.mxu0 0
    %802 = vmatpush1.bf16.msra.mxu0 0
    %803 = vmatprep.subr.bf16.mxu0 0
    %804 = vmatpush1.bf16.msra.mxu0 0
    %805 = vmatprep.subr.bf16.mxu0 0
    %806 = vmatpush1.bf16.msra.mxu0 0
    %807 = vmatprep.mubr.bf16.mxu0 0
    %808 = vmatmul.mubr.bf16.gmra.mrb[0].mxu0 %v761
    %v809 = vpop.f32.mrb[0].mxu0
    %v810 = vadd.f32 %v768, %v809
    %v811 = vpop.f32.mrb[0].mxu0
    %v812 = vadd.f32 %v772, %v811
    %v813 = vpop.f32.mrb[0].mxu0
    %v814 = vpop.f32.mrb[0].mxu0
    %815 = vdwg.mxu0
    %v816 = vtanh.pop %v810
    %v817 = vtanh.pop %v812
    %v818 = vpack.c.bf16 %v816, %v816
    %v819 = vpack.c.bf16 %v817, %v817
    %820 = vmatprep.subr.bf16.mxu0 0
    %821 = vmatpush1.bf16.msra.mxu0 %v357
    %822 = vmatprep.subr.bf16.mxu0 0
    %823 = vmatpush1.bf16.msra.mxu0 %v358
    %824 = vmatprep.subr.bf16.mxu0 0
    %825 = vmatpush1.bf16.msra.mxu0 %v359
    %826 = vmatprep.subr.bf16.mxu0 0
    %827 = vmatpush1.bf16.msra.mxu0 %v360
    %828 = vmatprep.subr.bf16.mxu0 0
    %829 = vmatpush1.bf16.msra.mxu0 %v361
    %830 = vmatprep.subr.bf16.mxu0 0
    %831 = vmatpush1.bf16.msra.mxu0 %v362
    %832 = vmatprep.subr.bf16.mxu0 0
    %833 = vmatpush1.bf16.msra.mxu0 %v363
    %834 = vmatprep.subr.bf16.mxu0 0
    %835 = vmatpush1.bf16.msra.mxu0 %v364
    %836 = vmatprep.subr.bf16.mxu0 0
    %837 = vmatpush1.bf16.msra.mxu0 %v365
    %838 = vmatprep.subr.bf16.mxu0 0
    %839 = vmatpush1.bf16.msra.mxu0 %v366
    %840 = vmatprep.subr.bf16.mxu0 0
    %841 = vmatpush1.bf16.msra.mxu0 %v367
    %842 = vmatprep.subr.bf16.mxu0 0
    %843 = vmatpush1.bf16.msra.mxu0 %v368
    %844 = vmatprep.subr.bf16.mxu0 0
    %845 = vmatpush1.bf16.msra.mxu0 %v369
    %846 = vmatprep.subr.bf16.mxu0 0
    %847 = vmatpush1.bf16.msra.mxu0 %v370
    %848 = vmatprep.subr.bf16.mxu0 0
    %849 = vmatpush1.bf16.msra.mxu0 %v371
    %850 = vmatprep.subr.bf16.mxu0 0
    %851 = vmatpush1.bf16.msra.mxu0 %v372
    %852 = vmatprep.mubr.bf16.mxu0 %v819
    %853 = vmatmul.mubr.bf16.gmra.mrb[0].mxu0 %v818
    %v854 = vpop.f32.mrb[0].mxu0
    %v855 = vadd.f32 %v150, %v854
    %v856 = vpop.f32.mrb[0].mxu0
    %v857 = vpop.f32.mrb[0].mxu0
    %v858 = vpop.f32.mrb[0].mxu0
    %859 = vdwg.mxu0
    %v860 = vmul.f32 %v760, 1.2321082
    %v861 = vmul.f32 %v855, 0.45455772
    %v862 = vsub.f32 %v860, %v861
    %s863 = scalar_lea.vmem [#allocation5], 8
    %v864 = vld [vmem:[%s863] sm:$0x3]
    %v865 = vmul.f32 %v864, 0.27904654
    %v866 = vadd.f32 %v862, %v865
    %v867 = vmul.f32 %v152, %v866
    %v868 = vadd.f32 %v867, %v153
    %v869 = vpack.c.bf16 %v868, %v868
    %s870 = scalar_lea.vmem [#allocation10], 10
    %v871 = vld [vmem:[%s870] sm:$0x3]
    %v873 = vlaneseq
    %v874 = vshrl.u32 %v873, 7
    %v875 = vsub.s32 0, %v874
    %v876 = vrot.slane %v871, %v875
    %v877 = vlaneseq
    %v878 = vshrl.u32 %v877, 7
    %v879 = vsub.s32 1, %v878
    %v880 = vrot.slane %v871, %v879
    %883 = vmatprep.subr.bf16.mxu0 %v217
    %884 = vmatpush1.bf16.msra.mxu0 %v216
    %885 = vmatprep.subr.bf16.mxu0 %v219
    %886 = vmatpush1.bf16.msra.mxu0 %v218
    %887 = vmatprep.subr.bf16.mxu0 %v221
    %888 = vmatpush1.bf16.msra.mxu0 %v220
    %889 = vmatprep.subr.bf16.mxu0 %v223
    %890 = vmatpush1.bf16.msra.mxu0 %v222
    %891 = vmatprep.subr.bf16.mxu0 %v225
    %892 = vmatpush1.bf16.msra.mxu0 %v224
    %893 = vmatprep.subr.bf16.mxu0 %v227
    %894 = vmatpush1.bf16.msra.mxu0 %v226
    %895 = vmatprep.subr.bf16.mxu0 %v229
    %896 = vmatpush1.bf16.msra.mxu0 %v228
    %897 = vmatprep.subr.bf16.mxu0 %v231
    %898 = vmatpush1.bf16.msra.mxu0 %v230
    %899 = vmatprep.subr.bf16.mxu0 0
    %900 = vmatpush1.bf16.msra.mxu0 0
    %901 = vmatprep.subr.bf16.mxu0 0
    %902 = vmatpush1.bf16.msra.mxu0 0
    %903 = vmatprep.subr.bf16.mxu0 0
    %904 = vmatpush1.bf16.msra.mxu0 0
    %905 = vmatprep.subr.bf16.mxu0 0
    %906 = vmatpush1.bf16.msra.mxu0 0
    %907 = vmatprep.subr.bf16.mxu0 0
    %908 = vmatpush1.bf16.msra.mxu0 0
    %909 = vmatprep.subr.bf16.mxu0 0
    %910 = vmatpush1.bf16.msra.mxu0 0
    %911 = vmatprep.subr.bf16.mxu0 0
    %912 = vmatpush1.bf16.msra.mxu0 0
    %913 = vmatprep.subr.bf16.mxu0 0
    %914 = vmatpush1.bf16.msra.mxu0 0
    %915 = vmatprep.mubr.bf16.mxu0 0
    %916 = vmatmul.mubr.bf16.gmra.mrb[0].mxu0 %v869
    %v917 = vpop.f32.mrb[0].mxu0
    %v918 = vadd.f32 %v876, %v917
    %v919 = vpop.f32.mrb[0].mxu0
    %v920 = vadd.f32 %v880, %v919
    %v921 = vpop.f32.mrb[0].mxu0
    %v922 = vpop.f32.mrb[0].mxu0
    %923 = vdwg.mxu0
    %v924 = vtanh.pop %v918
    %v925 = vtanh.pop %v920
    %v926 = vpack.c.bf16 %v924, %v924
    %v927 = vpack.c.bf16 %v925, %v925
    %928 = vmatprep.subr.bf16.mxu0 0
    %929 = vmatpush1.bf16.msra.mxu0 %v357
    %930 = vmatprep.subr.bf16.mxu0 0
    %931 = vmatpush1.bf16.msra.mxu0 %v358
    %932 = vmatprep.subr.bf16.mxu0 0
    %933 = vmatpush1.bf16.msra.mxu0 %v359
    %934 = vmatprep.subr.bf16.mxu0 0
    %935 = vmatpush1.bf16.msra.mxu0 %v360
    %936 = vmatprep.subr.bf16.mxu0 0
    %937 = vmatpush1.bf16.msra.mxu0 %v361
    %938 = vmatprep.subr.bf16.mxu0 0
    %939 = vmatpush1.bf16.msra.mxu0 %v362
    %940 = vmatprep.subr.bf16.mxu0 0
    %941 = vmatpush1.bf16.msra.mxu0 %v363
    %942 = vmatprep.subr.bf16.mxu0 0
    %943 = vmatpush1.bf16.msra.mxu0 %v364
    %944 = vmatprep.subr.bf16.mxu0 0
    %945 = vmatpush1.bf16.msra.mxu0 %v365
    %946 = vmatprep.subr.bf16.mxu0 0
    %947 = vmatpush1.bf16.msra.mxu0 %v366
    %948 = vmatprep.subr.bf16.mxu0 0
    %949 = vmatpush1.bf16.msra.mxu0 %v367
    %950 = vmatprep.subr.bf16.mxu0 0
    %951 = vmatpush1.bf16.msra.mxu0 %v368
    %952 = vmatprep.subr.bf16.mxu0 0
    %953 = vmatpush1.bf16.msra.mxu0 %v369
    %954 = vmatprep.subr.bf16.mxu0 0
    %955 = vmatpush1.bf16.msra.mxu0 %v370
    %956 = vmatprep.subr.bf16.mxu0 0
    %957 = vmatpush1.bf16.msra.mxu0 %v371
    %958 = vmatprep.subr.bf16.mxu0 0
    %959 = vmatpush1.bf16.msra.mxu0 %v372
    %960 = vmatprep.mubr.bf16.mxu0 %v927
    %961 = vmatmul.mubr.bf16.gmra.mrb[0].mxu0 %v926
    %v962 = vpop.f32.mrb[0].mxu0
    %v963 = vadd.f32 %v150, %v962
    %v964 = vpop.f32.mrb[0].mxu0
    %v965 = vpop.f32.mrb[0].mxu0
    %v966 = vpop.f32.mrb[0].mxu0
    %967 = vdwg.mxu0
    %v968 = vmul.f32 %v868, 1.1789045
    %v969 = vmul.f32 %v963, 0.3741627
    %v970 = vsub.f32 %v968, %v969
    %s971 = scalar_lea.vmem [#allocation5], 10
    %v972 = vld [vmem:[%s971] sm:$0x3]
    %v973 = vmul.f32 %v972, 0.2499091
    %v974 = vadd.f32 %v970, %v973
    %v975 = vmul.f32 %v152, %v974
    %v976 = vadd.f32 %v975, %v153
    %v977 = vpack.c.bf16 %v976, %v976
    %s978 = scalar_lea.vmem [#allocation10], 12
    %v979 = vld [vmem:[%s978] sm:$0x3]
    %v981 = vlaneseq
    %v982 = vshrl.u32 %v981, 7
    %v983 = vsub.s32 0, %v982
    %v984 = vrot.slane %v979, %v983
    %v985 = vlaneseq
    %v986 = vshrl.u32 %v985, 7
    %v987 = vsub.s32 1, %v986
    %v988 = vrot.slane %v979, %v987
    %991 = vmatprep.subr.bf16.mxu0 %v217
    %992 = vmatpush1.bf16.msra.mxu0 %v216
    %993 = vmatprep.subr.bf16.mxu0 %v219
    %994 = vmatpush1.bf16.msra.mxu0 %v218
    %995 = vmatprep.subr.bf16.mxu0 %v221
    %996 = vmatpush1.bf16.msra.mxu0 %v220
    %997 = vmatprep.subr.bf16.mxu0 %v223
    %998 = vmatpush1.bf16.msra.mxu0 %v222
    %999 = vmatprep.subr.bf16.mxu0 %v225
    %1000 = vmatpush1.bf16.msra.mxu0 %v224
    %1001 = vmatprep.subr.bf16.mxu0 %v227
    %1002 = vmatpush1.bf16.msra.mxu0 %v226
    %1003 = vmatprep.subr.bf16.mxu0 %v229
    %1004 = vmatpush1.bf16.msra.mxu0 %v228
    %1005 = vmatprep.subr.bf16.mxu0 %v231
    %1006 = vmatpush1.bf16.msra.mxu0 %v230
    %1007 = vmatprep.subr.bf16.mxu0 0
    %1008 = vmatpush1.bf16.msra.mxu0 0
    %1009 = vmatprep.subr.bf16.mxu0 0
    %1010 = vmatpush1.bf16.msra.mxu0 0
    %1011 = vmatprep.subr.bf16.mxu0 0
    %1012 = vmatpush1.bf16.msra.mxu0 0
    %1013 = vmatprep.subr.bf16.mxu0 0
    %1014 = vmatpush1.bf16.msra.mxu0 0
    %1015 = vmatprep.subr.bf16.mxu0 0
    %1016 = vmatpush1.bf16.msra.mxu0 0
    %1017 = vmatprep.subr.bf16.mxu0 0
    %1018 = vmatpush1.bf16.msra.mxu0 0
    %1019 = vmatprep.subr.bf16.mxu0 0
    %1020 = vmatpush1.bf16.msra.mxu0 0
    %1021 = vmatprep.subr.bf16.mxu0 0
    %1022 = vmatpush1.bf16.msra.mxu0 0
    %1023 = vmatprep.mubr.bf16.mxu0 0
    %1024 = vmatmul.mubr.bf16.gmra.mrb[0].mxu0 %v977
    %v1025 = vpop.f32.mrb[0].mxu0
    %v1026 = vadd.f32 %v984, %v1025
    %v1027 = vpop.f32.mrb[0].mxu0
    %v1028 = vadd.f32 %v988, %v1027
    %v1029 = vpop.f32.mrb[0].mxu0
    %v1030 = vpop.f32.mrb[0].mxu0
    %1031 = vdwg.mxu0
    %v1032 = vtanh.pop %v1026
    %v1033 = vtanh.pop %v1028
    %v1034 = vpack.c.bf16 %v1032, %v1032
    %v1035 = vpack.c.bf16 %v1033, %v1033
    %1036 = vmatprep.subr.bf16.mxu0 0
    %1037 = vmatpush1.bf16.msra.mxu0 %v357
    %1038 = vmatprep.subr.bf16.mxu0 0
    %1039 = vmatpush1.bf16.msra.mxu0 %v358
    %1040 = vmatprep.subr.bf16.mxu0 0
    %1041 = vmatpush1.bf16.msra.mxu0 %v359
    %1042 = vmatprep.subr.bf16.mxu0 0
    %1043 = vmatpush1.bf16.msra.mxu0 %v360
    %1044 = vmatprep.subr.bf16.mxu0 0
    %1045 = vmatpush1.bf16.msra.mxu0 %v361
    %1046 = vmatprep.subr.bf16.mxu0 0
    %1047 = vmatpush1.bf16.msra.mxu0 %v362
    %1048 = vmatprep.subr.bf16.mxu0 0
    %1049 = vmatpush1.bf16.msra.mxu0 %v363
    %1050 = vmatprep.subr.bf16.mxu0 0
    %1051 = vmatpush1.bf16.msra.mxu0 %v364
    %1052 = vmatprep.subr.bf16.mxu0 0
    %1053 = vmatpush1.bf16.msra.mxu0 %v365
    %1054 = vmatprep.subr.bf16.mxu0 0
    %1055 = vmatpush1.bf16.msra.mxu0 %v366
    %1056 = vmatprep.subr.bf16.mxu0 0
    %1057 = vmatpush1.bf16.msra.mxu0 %v367
    %1058 = vmatprep.subr.bf16.mxu0 0
    %1059 = vmatpush1.bf16.msra.mxu0 %v368
    %1060 = vmatprep.subr.bf16.mxu0 0
    %1061 = vmatpush1.bf16.msra.mxu0 %v369
    %1062 = vmatprep.subr.bf16.mxu0 0
    %1063 = vmatpush1.bf16.msra.mxu0 %v370
    %1064 = vmatprep.subr.bf16.mxu0 0
    %1065 = vmatpush1.bf16.msra.mxu0 %v371
    %1066 = vmatprep.subr.bf16.mxu0 0
    %1067 = vmatpush1.bf16.msra.mxu0 %v372
    %1068 = vmatprep.mubr.bf16.mxu0 %v1035
    %1069 = vmatmul.mubr.bf16.gmra.mrb[0].mxu0 %v1034
    %v1070 = vpop.f32.mrb[0].mxu0
    %v1071 = vadd.f32 %v150, %v1070
    %v1072 = vpop.f32.mrb[0].mxu0
    %v1073 = vpop.f32.mrb[0].mxu0
    %v1074 = vpop.f32.mrb[0].mxu0
    %1075 = vdwg.mxu0
    %v1076 = vmul.f32 %v976, 1.1422765
    %v1077 = vmul.f32 %v1071, 0.31993082
    %v1078 = vsub.f32 %v1076, %v1077
    %s1079 = scalar_lea.vmem [#allocation5], 12
    %v1080 = vld [vmem:[%s1079] sm:$0x3]
    %v1081 = vmul.f32 %v1080, 0.2249666
    %v1082 = vadd.f32 %v1078, %v1081
    %v1083 = vmul.f32 %v152, %v1082
    %v1084 = vadd.f32 %v1083, %v153
    %v1085 = vpack.c.bf16 %v1084, %v1084
    %s1086 = scalar_lea.vmem [#allocation10], 14
    %v1087 = vld [vmem:[%s1086] sm:$0x3]
    %v1089 = vlaneseq
    %v1090 = vshrl.u32 %v1089, 7
    %v1091 = vsub.s32 0, %v1090
    %v1092 = vrot.slane %v1087, %v1091
    %v1093 = vlaneseq
    %v1094 = vshrl.u32 %v1093, 7
    %v1095 = vsub.s32 1, %v1094
    %v1096 = vrot.slane %v1087, %v1095
    %1099 = vmatprep.subr.bf16.mxu0 %v217
    %1100 = vmatpush1.bf16.msra.mxu0 %v216
    %1101 = vmatprep.subr.bf16.mxu0 %v219
    %1102 = vmatpush1.bf16.msra.mxu0 %v218
    %1103 = vmatprep.subr.bf16.mxu0 %v221
    %1104 = vmatpush1.bf16.msra.mxu0 %v220
    %1105 = vmatprep.subr.bf16.mxu0 %v223
    %1106 = vmatpush1.bf16.msra.mxu0 %v222
    %1107 = vmatprep.subr.bf16.mxu0 %v225
    %1108 = vmatpush1.bf16.msra.mxu0 %v224
    %1109 = vmatprep.subr.bf16.mxu0 %v227
    %1110 = vmatpush1.bf16.msra.mxu0 %v226
    %1111 = vmatprep.subr.bf16.mxu0 %v229
    %1112 = vmatpush1.bf16.msra.mxu0 %v228
    %1113 = vmatprep.subr.bf16.mxu0 %v231
    %1114 = vmatpush1.bf16.msra.mxu0 %v230
    %1115 = vmatprep.subr.bf16.mxu0 0
    %1116 = vmatpush1.bf16.msra.mxu0 0
    %1117 = vmatprep.subr.bf16.mxu0 0
    %1118 = vmatpush1.bf16.msra.mxu0 0
    %1119 = vmatprep.subr.bf16.mxu0 0
    %1120 = vmatpush1.bf16.msra.mxu0 0
    %1121 = vmatprep.subr.bf16.mxu0 0
    %1122 = vmatpush1.bf16.msra.mxu0 0
    %1123 = vmatprep.subr.bf16.mxu0 0
    %1124 = vmatpush1.bf16.msra.mxu0 0
    %1125 = vmatprep.subr.bf16.mxu0 0
    %1126 = vmatpush1.bf16.msra.mxu0 0
    %1127 = vmatprep.subr.bf16.mxu0 0
    %1128 = vmatpush1.bf16.msra.mxu0 0
    %1129 = vmatprep.subr.bf16.mxu0 0
    %1130 = vmatpush1.bf16.msra.mxu0 0
    %1131 = vmatprep.mubr.bf16.mxu0 0
    %1132 = vmatmul.mubr.bf16.gmra.mrb[0].mxu0 %v1085
    %v1133 = vpop.f32.mrb[0].mxu0
    %v1134 = vadd.f32 %v1092, %v1133
    %v1135 = vpop.f32.mrb[0].mxu0
    %v1136 = vadd.f32 %v1096, %v1135
    %v1137 = vpop.f32.mrb[0].mxu0
    %v1138 = vpop.f32.mrb[0].mxu0
    %1139 = vdwg.mxu0
    %v1140 = vtanh.pop %v1134
    %v1141 = vtanh.pop %v1136
    %v1142 = vpack.c.bf16 %v1140, %v1140
    %v1143 = vpack.c.bf16 %v1141, %v1141
    %1144 = vmatprep.subr.bf16.mxu0 0
    %1145 = vmatpush1.bf16.msra.mxu0 %v357
    %1146 = vmatprep.subr.bf16.mxu0 0
    %1147 = vmatpush1.bf16.msra.mxu0 %v358
    %1148 = vmatprep.subr.bf16.mxu0 0
    %1149 = vmatpush1.bf16.msra.mxu0 %v359
    %1150 = vmatprep.subr.bf16.mxu0 0
    %1151 = vmatpush1.bf16.msra.mxu0 %v360
    %1152 = vmatprep.subr.bf16.mxu0 0
    %1153 = vmatpush1.bf16.msra.mxu0 %v361
    %1154 = vmatprep.subr.bf16.mxu0 0
    %1155 = vmatpush1.bf16.msra.mxu0 %v362
    %1156 = vmatprep.subr.bf16.mxu0 0
    %1157 = vmatpush1.bf16.msra.mxu0 %v363
    %1158 = vmatprep.subr.bf16.mxu0 0
    %1159 = vmatpush1.bf16.msra.mxu0 %v364
    %1160 = vmatprep.subr.bf16.mxu0 0
    %1161 = vmatpush1.bf16.msra.mxu0 %v365
    %1162 = vmatprep.subr.bf16.mxu0 0
    %1163 = vmatpush1.bf16.msra.mxu0 %v366
    %1164 = vmatprep.subr.bf16.mxu0 0
    %1165 = vmatpush1.bf16.msra.mxu0 %v367
    %1166 = vmatprep.subr.bf16.mxu0 0
    %1167 = vmatpush1.bf16.msra.mxu0 %v368
    %1168 = vmatprep.subr.bf16.mxu0 0
    %1169 = vmatpush1.bf16.msra.mxu0 %v369
    %1170 = vmatprep.subr.bf16.mxu0 0
    %1171 = vmatpush1.bf16.msra.mxu0 %v370
    %1172 = vmatprep.subr.bf16.mxu0 0
    %1173 = vmatpush1.bf16.msra.mxu0 %v371
    %1174 = vmatprep.subr.bf16.mxu0 0
    %1175 = vmatpush1.bf16.msra.mxu0 %v372
    %1176 = vmatprep.mubr.bf16.mxu0 %v1143
    %1177 = vmatmul.mubr.bf16.gmra.mrb[0].mxu0 %v1142
    %v1178 = vpop.f32.mrb[0].mxu0
    %v1179 = vadd.f32 %v150, %v1178
    %v1180 = vpop.f32.mrb[0].mxu0
    %v1181 = vpop.f32.mrb[0].mxu0
    %v1182 = vpop.f32.mrb[0].mxu0
    %1183 = vdwg.mxu0
    %v1184 = vmul.f32 %v1084, 1.1150768
    %v1185 = vmul.f32 %v1179, 0.28113368
    %v1186 = vsub.f32 %v1184, %v1185
    %s1187 = scalar_lea.vmem [#allocation5], 14
    %v1188 = vld [vmem:[%s1187] sm:$0x3]
    %v1189 = vmul.f32 %v1188, 0.20270678
    %v1190 = vadd.f32 %v1186, %v1189
    %v1191 = vmul.f32 %v152, %v1190
    %v1192 = vadd.f32 %v1191, %v153
    %v1193 = vpack.c.bf16 %v1192, %v1192
    %s1194 = scalar_lea.vmem [#allocation10], 16
    %v1195 = vld [vmem:[%s1194] sm:$0x3]
    %v1197 = vlaneseq
    %v1198 = vshrl.u32 %v1197, 7
    %v1199 = vsub.s32 0, %v1198
    %v1200 = vrot.slane %v1195, %v1199
    %v1201 = vlaneseq
    %v1202 = vshrl.u32 %v1201, 7
    %v1203 = vsub.s32 1, %v1202
    %v1204 = vrot.slane %v1195, %v1203
    %1207 = vmatprep.subr.bf16.mxu0 %v217
    %1208 = vmatpush1.bf16.msra.mxu0 %v216
    %1209 = vmatprep.subr.bf16.mxu0 %v219
    %1210 = vmatpush1.bf16.msra.mxu0 %v218
    %1211 = vmatprep.subr.bf16.mxu0 %v221
    %1212 = vmatpush1.bf16.msra.mxu0 %v220
    %1213 = vmatprep.subr.bf16.mxu0 %v223
    %1214 = vmatpush1.bf16.msra.mxu0 %v222
    %1215 = vmatprep.subr.bf16.mxu0 %v225
    %1216 = vmatpush1.bf16.msra.mxu0 %v224
    %1217 = vmatprep.subr.bf16.mxu0 %v227
    %1218 = vmatpush1.bf16.msra.mxu0 %v226
    %1219 = vmatprep.subr.bf16.mxu0 %v229
    %1220 = vmatpush1.bf16.msra.mxu0 %v228
    %1221 = vmatprep.subr.bf16.mxu0 %v231
    %1222 = vmatpush1.bf16.msra.mxu0 %v230
    %1223 = vmatprep.subr.bf16.mxu0 0
    %1224 = vmatpush1.bf16.msra.mxu0 0
    %1225 = vmatprep.subr.bf16.mxu0 0
    %1226 = vmatpush1.bf16.msra.mxu0 0
    %1227 = vmatprep.subr.bf16.mxu0 0
    %1228 = vmatpush1.bf16.msra.mxu0 0
    %1229 = vmatprep.subr.bf16.mxu0 0
    %1230 = vmatpush1.bf16.msra.mxu0 0
    %1231 = vmatprep.subr.bf16.mxu0 0
    %1232 = vmatpush1.bf16.msra.mxu0 0
    %1233 = vmatprep.subr.bf16.mxu0 0
    %1234 = vmatpush1.bf16.msra.mxu0 0
    %1235 = vmatprep.subr.bf16.mxu0 0
    %1236 = vmatpush1.bf16.msra.mxu0 0
    %1237 = vmatprep.subr.bf16.mxu0 0
    %1238 = vmatpush1.bf16.msra.mxu0 0
    %1239 = vmatprep.mubr.bf16.mxu0 0
    %1240 = vmatmul.mubr.bf16.gmra.mrb[0].mxu0 %v1193
    %v1241 = vpop.f32.mrb[0].mxu0
    %v1242 = vadd.f32 %v1200, %v1241
    %v1243 = vpop.f32.mrb[0].mxu0
    %v1244 = vadd.f32 %v1204, %v1243
    %v1245 = vpop.f32.mrb[0].mxu0
    %v1246 = vpop.f32.mrb[0].mxu0
    %1247 = vdwg.mxu0
    %v1248 = vtanh.pop %v1242
    %v1249 = vtanh.pop %v1244
    %v1250 = vpack.c.bf16 %v1248, %v1248
    %v1251 = vpack.c.bf16 %v1249, %v1249
    %1252 = vmatprep.subr.bf16.mxu0 0
    %1253 = vmatpush1.bf16.msra.mxu0 %v357
    %1254 = vmatprep.subr.bf16.mxu0 0
    %1255 = vmatpush1.bf16.msra.mxu0 %v358
    %1256 = vmatprep.subr.bf16.mxu0 0
    %1257 = vmatpush1.bf16.msra.mxu0 %v359
    %1258 = vmatprep.subr.bf16.mxu0 0
    %1259 = vmatpush1.bf16.msra.mxu0 %v360
    %1260 = vmatprep.subr.bf16.mxu0 0
    %1261 = vmatpush1.bf16.msra.mxu0 %v361
    %1262 = vmatprep.subr.bf16.mxu0 0
    %1263 = vmatpush1.bf16.msra.mxu0 %v362
    %1264 = vmatprep.subr.bf16.mxu0 0
    %1265 = vmatpush1.bf16.msra.mxu0 %v363
    %1266 = vmatprep.subr.bf16.mxu0 0
    %1267 = vmatpush1.bf16.msra.mxu0 %v364
    %1268 = vmatprep.subr.bf16.mxu0 0
    %1269 = vmatpush1.bf16.msra.mxu0 %v365
    %1270 = vmatprep.subr.bf16.mxu0 0
    %1271 = vmatpush1.bf16.msra.mxu0 %v366
    %1272 = vmatprep.subr.bf16.mxu0 0
    %1273 = vmatpush1.bf16.msra.mxu0 %v367
    %1274 = vmatprep.subr.bf16.mxu0 0
    %1275 = vmatpush1.bf16.msra.mxu0 %v368
    %1276 = vmatprep.subr.bf16.mxu0 0
    %1277 = vmatpush1.bf16.msra.mxu0 %v369
    %1278 = vmatprep.subr.bf16.mxu0 0
    %1279 = vmatpush1.bf16.msra.mxu0 %v370
    %1280 = vmatprep.subr.bf16.mxu0 0
    %1281 = vmatpush1.bf16.msra.mxu0 %v371
    %1282 = vmatprep.subr.bf16.mxu0 0
    %1283 = vmatpush1.bf16.msra.mxu0 %v372
    %1284 = vmatprep.mubr.bf16.mxu0 %v1251
    %1285 = vmatmul.mubr.bf16.gmra.mrb[0].mxu0 %v1250
    %v1286 = vpop.f32.mrb[0].mxu0
    %v1287 = vadd.f32 %v150, %v1286
    %v1288 = vpop.f32.mrb[0].mxu0
    %v1289 = vpop.f32.mrb[0].mxu0
    %v1290 = vpop.f32.mrb[0].mxu0
    %1291 = vdwg.mxu0
    %v1292 = vmul.f32 %v1192, 1.0937223
    %v1293 = vmul.f32 %v1287, 0.25218135
    %v1294 = vsub.f32 %v1292, %v1293
    %s1295 = scalar_lea.vmem [#allocation5], 16
    %v1296 = vld [vmem:[%s1295] sm:$0x3]
    %v1297 = vmul.f32 %v1296, 0.18209423
    %v1298 = vadd.f32 %v1294, %v1297
    %v1299 = vmul.f32 %v152, %v1298
    %v1300 = vadd.f32 %v1299, %v153
    %v1301 = vpack.c.bf16 %v1300, %v1300
    %s1302 = scalar_lea.vmem [#allocation10], 18
    %v1303 = vld [vmem:[%s1302] sm:$0x3]
    %v1305 = vlaneseq
    %v1306 = vshrl.u32 %v1305, 7
    %v1307 = vsub.s32 0, %v1306
    %v1308 = vrot.slane %v1303, %v1307
    %v1309 = vlaneseq
    %v1310 = vshrl.u32 %v1309, 7
    %v1311 = vsub.s32 1, %v1310
    %v1312 = vrot.slane %v1303, %v1311
    %1315 = vmatprep.subr.bf16.mxu0 %v217
    %1316 = vmatpush1.bf16.msra.mxu0 %v216
    %1317 = vmatprep.subr.bf16.mxu0 %v219
    %1318 = vmatpush1.bf16.msra.mxu0 %v218
    %1319 = vmatprep.subr.bf16.mxu0 %v221
    %1320 = vmatpush1.bf16.msra.mxu0 %v220
    %1321 = vmatprep.subr.bf16.mxu0 %v223
    %1322 = vmatpush1.bf16.msra.mxu0 %v222
    %1323 = vmatprep.subr.bf16.mxu0 %v225
    %1324 = vmatpush1.bf16.msra.mxu0 %v224
    %1325 = vmatprep.subr.bf16.mxu0 %v227
    %1326 = vmatpush1.bf16.msra.mxu0 %v226
    %1327 = vmatprep.subr.bf16.mxu0 %v229
    %1328 = vmatpush1.bf16.msra.mxu0 %v228
    %1329 = vmatprep.subr.bf16.mxu0 %v231
    %1330 = vmatpush1.bf16.msra.mxu0 %v230
    %1331 = vmatprep.subr.bf16.mxu0 0
    %1332 = vmatpush1.bf16.msra.mxu0 0
    %1333 = vmatprep.subr.bf16.mxu0 0
    %1334 = vmatpush1.bf16.msra.mxu0 0
    %1335 = vmatprep.subr.bf16.mxu0 0
    %1336 = vmatpush1.bf16.msra.mxu0 0
    %1337 = vmatprep.subr.bf16.mxu0 0
    %1338 = vmatpush1.bf16.msra.mxu0 0
    %1339 = vmatprep.subr.bf16.mxu0 0
    %1340 = vmatpush1.bf16.msra.mxu0 0
    %1341 = vmatprep.subr.bf16.mxu0 0
    %1342 = vmatpush1.bf16.msra.mxu0 0
    %1343 = vmatprep.subr.bf16.mxu0 0
    %1344 = vmatpush1.bf16.msra.mxu0 0
    %1345 = vmatprep.subr.bf16.mxu0 0
    %1346 = vmatpush1.bf16.msra.mxu0 0
    %1347 = vmatprep.mubr.bf16.mxu0 0
    %1348 = vmatmul.mubr.bf16.gmra.mrb[0].mxu0 %v1301
    %v1349 = vpop.f32.mrb[0].mxu0
    %v1350 = vadd.f32 %v1308, %v1349
    %v1351 = vpop.f32.mrb[0].mxu0
    %v1352 = vadd.f32 %v1312, %v1351
    %v1353 = vpop.f32.mrb[0].mxu0
    %v1354 = vpop.f32.mrb[0].mxu0
    %1355 = vdwg.mxu0
    %v1356 = vtanh.pop %v1350
    %v1357 = vtanh.pop %v1352
    %v1358 = vpack.c.bf16 %v1356, %v1356
    %v1359 = vpack.c.bf16 %v1357, %v1357
    %1360 = vmatprep.subr.bf16.mxu0 0
    %1361 = vmatpush1.bf16.msra.mxu0 %v357
    %1362 = vmatprep.subr.bf16.mxu0 0
    %1363 = vmatpush1.bf16.msra.mxu0 %v358
    %1364 = vmatprep.subr.bf16.mxu0 0
    %1365 = vmatpush1.bf16.msra.mxu0 %v359
    %1366 = vmatprep.subr.bf16.mxu0 0
    %1367 = vmatpush1.bf16.msra.mxu0 %v360
    %1368 = vmatprep.subr.bf16.mxu0 0
    %1369 = vmatpush1.bf16.msra.mxu0 %v361
    %1370 = vmatprep.subr.bf16.mxu0 0
    %1371 = vmatpush1.bf16.msra.mxu0 %v362
    %1372 = vmatprep.subr.bf16.mxu0 0
    %1373 = vmatpush1.bf16.msra.mxu0 %v363
    %1374 = vmatprep.subr.bf16.mxu0 0
    %1375 = vmatpush1.bf16.msra.mxu0 %v364
    %1376 = vmatprep.subr.bf16.mxu0 0
    %1377 = vmatpush1.bf16.msra.mxu0 %v365
    %1378 = vmatprep.subr.bf16.mxu0 0
    %1379 = vmatpush1.bf16.msra.mxu0 %v366
    %1380 = vmatprep.subr.bf16.mxu0 0
    %1381 = vmatpush1.bf16.msra.mxu0 %v367
    %1382 = vmatprep.subr.bf16.mxu0 0
    %1383 = vmatpush1.bf16.msra.mxu0 %v368
    %1384 = vmatprep.subr.bf16.mxu0 0
    %1385 = vmatpush1.bf16.msra.mxu0 %v369
    %1386 = vmatprep.subr.bf16.mxu0 0
    %1387 = vmatpush1.bf16.msra.mxu0 %v370
    %1388 = vmatprep.subr.bf16.mxu0 0
    %1389 = vmatpush1.bf16.msra.mxu0 %v371
    %1390 = vmatprep.subr.bf16.mxu0 0
    %1391 = vmatpush1.bf16.msra.mxu0 %v372
    %1392 = vmatprep.mubr.bf16.mxu0 %v1359
    %1393 = vmatmul.mubr.bf16.gmra.mrb[0].mxu0 %v1358
    %v1394 = vpop.f32.mrb[0].mxu0
    %v1395 = vadd.f32 %v150, %v1394
    %v1396 = vpop.f32.mrb[0].mxu0
    %v1397 = vpop.f32.mrb[0].mxu0
    %v1398 = vpop.f32.mrb[0].mxu0
    %1399 = vdwg.mxu0
    %v1400 = vmul.f32 %v1300, 1.0762128
    %v1401 = vmul.f32 %v1395, 0.22983025
    %v1402 = vsub.f32 %v1400, %v1401
    %s1403 = scalar_lea.vmem [#allocation5], 18
    %v1404 = vld [vmem:[%s1403] sm:$0x3]
    %v1405 = vmul.f32 %v1404, 0.1623361
    %v1406 = vadd.f32 %v1402, %v1405
    %v1407 = vmul.f32 %v152, %v1406
    %v1408 = vadd.f32 %v1407, %v153
    %v1409 = vpack.c.bf16 %v1408, %v1408
    %s1410 = scalar_lea.vmem [#allocation10], 20
    %v1411 = vld [vmem:[%s1410] sm:$0x3]
    %v1413 = vlaneseq
    %v1414 = vshrl.u32 %v1413, 7
    %v1415 = vsub.s32 0, %v1414
    %v1416 = vrot.slane %v1411, %v1415
    %v1417 = vlaneseq
    %v1418 = vshrl.u32 %v1417, 7
    %v1419 = vsub.s32 1, %v1418
    %v1420 = vrot.slane %v1411, %v1419
    %1423 = vmatprep.subr.bf16.mxu0 %v217
    %1424 = vmatpush1.bf16.msra.mxu0 %v216
    %1425 = vmatprep.subr.bf16.mxu0 %v219
    %1426 = vmatpush1.bf16.msra.mxu0 %v218
    %1427 = vmatprep.subr.bf16.mxu0 %v221
    %1428 = vmatpush1.bf16.msra.mxu0 %v220
    %1429 = vmatprep.subr.bf16.mxu0 %v223
    %1430 = vmatpush1.bf16.msra.mxu0 %v222
    %1431 = vmatprep.subr.bf16.mxu0 %v225
    %1432 = vmatpush1.bf16.msra.mxu0 %v224
    %1433 = vmatprep.subr.bf16.mxu0 %v227
    %1434 = vmatpush1.bf16.msra.mxu0 %v226
    %1435 = vmatprep.subr.bf16.mxu0 %v229
    %1436 = vmatpush1.bf16.msra.mxu0 %v228
    %1437 = vmatprep.subr.bf16.mxu0 %v231
    %1438 = vmatpush1.bf16.msra.mxu0 %v230
    %1439 = vmatprep.subr.bf16.mxu0 0
    %1440 = vmatpush1.bf16.msra.mxu0 0
    %1441 = vmatprep.subr.bf16.mxu0 0
    %1442 = vmatpush1.bf16.msra.mxu0 0
    %1443 = vmatprep.subr.bf16.mxu0 0
    %1444 = vmatpush1.bf16.msra.mxu0 0
    %1445 = vmatprep.subr.bf16.mxu0 0
    %1446 = vmatpush1.bf16.msra.mxu0 0
    %1447 = vmatprep.subr.bf16.mxu0 0
    %1448 = vmatpush1.bf16.msra.mxu0 0
    %1449 = vmatprep.subr.bf16.mxu0 0
    %1450 = vmatpush1.bf16.msra.mxu0 0
    %1451 = vmatprep.subr.bf16.mxu0 0
    %1452 = vmatpush1.bf16.msra.mxu0 0
    %1453 = vmatprep.subr.bf16.mxu0 0
    %1454 = vmatpush1.bf16.msra.mxu0 0
    %1455 = vmatprep.mubr.bf16.mxu0 0
    %1456 = vmatmul.mubr.bf16.gmra.mrb[0].mxu0 %v1409
    %v1457 = vpop.f32.mrb[0].mxu0
    %v1458 = vadd.f32 %v1416, %v1457
    %v1459 = vpop.f32.mrb[0].mxu0
    %v1460 = vadd.f32 %v1420, %v1459
    %v1461 = vpop.f32.mrb[0].mxu0
    %v1462 = vpop.f32.mrb[0].mxu0
    %1463 = vdwg.mxu0
    %v1464 = vtanh.pop %v1458
    %v1465 = vtanh.pop %v1460
    %v1466 = vpack.c.bf16 %v1464, %v1464
    %v1467 = vpack.c.bf16 %v1465, %v1465
    %1468 = vmatprep.subr.bf16.mxu0 0
    %1469 = vmatpush1.bf16.msra.mxu0 %v357
    %1470 = vmatprep.subr.bf16.mxu0 0
    %1471 = vmatpush1.bf16.msra.mxu0 %v358
    %1472 = vmatprep.subr.bf16.mxu0 0
    %1473 = vmatpush1.bf16.msra.mxu0 %v359
    %1474 = vmatprep.subr.bf16.mxu0 0
    %1475 = vmatpush1.bf16.msra.mxu0 %v360
    %1476 = vmatprep.subr.bf16.mxu0 0
    %1477 = vmatpush1.bf16.msra.mxu0 %v361
    %1478 = vmatprep.subr.bf16.mxu0 0
    %1479 = vmatpush1.bf16.msra.mxu0 %v362
    %1480 = vmatprep.subr.bf16.mxu0 0
    %1481 = vmatpush1.bf16.msra.mxu0 %v363
    %1482 = vmatprep.subr.bf16.mxu0 0
    %1483 = vmatpush1.bf16.msra.mxu0 %v364
    %1484 = vmatprep.subr.bf16.mxu0 0
    %1485 = vmatpush1.bf16.msra.mxu0 %v365
    %1486 = vmatprep.subr.bf16.mxu0 0
    %1487 = vmatpush1.bf16.msra.mxu0 %v366
    %1488 = vmatprep.subr.bf16.mxu0 0
    %1489 = vmatpush1.bf16.msra.mxu0 %v367
    %1490 = vmatprep.subr.bf16.mxu0 0
    %1491 = vmatpush1.bf16.msra.mxu0 %v368
    %1492 = vmatprep.subr.bf16.mxu0 0
    %1493 = vmatpush1.bf16.msra.mxu0 %v369
    %1494 = vmatprep.subr.bf16.mxu0 0
    %1495 = vmatpush1.bf16.msra.mxu0 %v370
    %1496 = vmatprep.subr.bf16.mxu0 0
    %1497 = vmatpush1.bf16.msra.mxu0 %v371
    %1498 = vmatprep.subr.bf16.mxu0 0
    %1499 = vmatpush1.bf16.msra.mxu0 %v372
    %1500 = vmatprep.mubr.bf16.mxu0 %v1467
    %1501 = vmatmul.mubr.bf16.gmra.mrb[0].mxu0 %v1466
    %v1502 = vpop.f32.mrb[0].mxu0
    %v1503 = vadd.f32 %v150, %v1502
    %v1504 = vpop.f32.mrb[0].mxu0
    %v1505 = vpop.f32.mrb[0].mxu0
    %v1506 = vpop.f32.mrb[0].mxu0
    %1507 = vdwg.mxu0
    %v1508 = vmul.f32 %v1408, 1.0613374
    %v1509 = vmul.f32 %v1503, 0.21199845
    %v1510 = vsub.f32 %v1508, %v1509
    %s1511 = scalar_lea.vmem [#allocation5], 20
    %v1512 = vld [vmem:[%s1511] sm:$0x3]
    %v1513 = vmul.f32 %v1512, 0.1427354
    %v1514 = vadd.f32 %v1510, %v1513
    %v1515 = vmul.f32 %v152, %v1514
    %v1516 = vadd.f32 %v1515, %v153
    %v1517 = vpack.c.bf16 %v1516, %v1516
    %s1518 = scalar_lea.vmem [#allocation10], 22
    %v1519 = vld [vmem:[%s1518] sm:$0x3]
    %v1521 = vlaneseq
    %v1522 = vshrl.u32 %v1521, 7
    %v1523 = vsub.s32 0, %v1522
    %v1524 = vrot.slane %v1519, %v1523
    %v1525 = vlaneseq
    %v1526 = vshrl.u32 %v1525, 7
    %v1527 = vsub.s32 1, %v1526
    %v1528 = vrot.slane %v1519, %v1527
    %1531 = vmatprep.subr.bf16.mxu0 %v217
    %1532 = vmatpush1.bf16.msra.mxu0 %v216
    %1533 = vmatprep.subr.bf16.mxu0 %v219
    %1534 = vmatpush1.bf16.msra.mxu0 %v218
    %1535 = vmatprep.subr.bf16.mxu0 %v221
    %1536 = vmatpush1.bf16.msra.mxu0 %v220
    %1537 = vmatprep.subr.bf16.mxu0 %v223
    %1538 = vmatpush1.bf16.msra.mxu0 %v222
    %1539 = vmatprep.subr.bf16.mxu0 %v225
    %1540 = vmatpush1.bf16.msra.mxu0 %v224
    %1541 = vmatprep.subr.bf16.mxu0 %v227
    %1542 = vmatpush1.bf16.msra.mxu0 %v226
    %1543 = vmatprep.subr.bf16.mxu0 %v229
    %1544 = vmatpush1.bf16.msra.mxu0 %v228
    %1545 = vmatprep.subr.bf16.mxu0 %v231
    %1546 = vmatpush1.bf16.msra.mxu0 %v230
    %1547 = vmatprep.subr.bf16.mxu0 0
    %1548 = vmatpush1.bf16.msra.mxu0 0
    %1549 = vmatprep.subr.bf16.mxu0 0
    %1550 = vmatpush1.bf16.msra.mxu0 0
    %1551 = vmatprep.subr.bf16.mxu0 0
    %1552 = vmatpush1.bf16.msra.mxu0 0
    %1553 = vmatprep.subr.bf16.mxu0 0
    %1554 = vmatpush1.bf16.msra.mxu0 0
    %1555 = vmatprep.subr.bf16.mxu0 0
    %1556 = vmatpush1.bf16.msra.mxu0 0
    %1557 = vmatprep.subr.bf16.mxu0 0
    %1558 = vmatpush1.bf16.msra.mxu0 0
    %1559 = vmatprep.subr.bf16.mxu0 0
    %1560 = vmatpush1.bf16.msra.mxu0 0
    %1561 = vmatprep.subr.bf16.mxu0 0
    %1562 = vmatpush1.bf16.msra.mxu0 0
    %1563 = vmatprep.mubr.bf16.mxu0 0
    %1564 = vmatmul.mubr.bf16.gmra.mrb[0].mxu0 %v1517
    %v1565 = vpop.f32.mrb[0].mxu0
    %v1566 = vadd.f32 %v1524, %v1565
    %v1567 = vpop.f32.mrb[0].mxu0
    %v1568 = vadd.f32 %v1528, %v1567
    %v1569 = vpop.f32.mrb[0].mxu0
    %v1570 = vpop.f32.mrb[0].mxu0
    %1571 = vdwg.mxu0
    %v1572 = vtanh.pop %v1566
    %v1573 = vtanh.pop %v1568
    %v1574 = vpack.c.bf16 %v1572, %v1572
    %v1575 = vpack.c.bf16 %v1573, %v1573
    %1576 = vmatprep.subr.bf16.mxu0 0
    %1577 = vmatpush1.bf16.msra.mxu0 %v357
    %1578 = vmatprep.subr.bf16.mxu0 0
    %1579 = vmatpush1.bf16.msra.mxu0 %v358
    %1580 = vmatprep.subr.bf16.mxu0 0
    %1581 = vmatpush1.bf16.msra.mxu0 %v359
    %1582 = vmatprep.subr.bf16.mxu0 0
    %1583 = vmatpush1.bf16.msra.mxu0 %v360
    %1584 = vmatprep.subr.bf16.mxu0 0
    %1585 = vmatpush1.bf16.msra.mxu0 %v361
    %1586 = vmatprep.subr.bf16.mxu0 0
    %1587 = vmatpush1.bf16.msra.mxu0 %v362
    %1588 = vmatprep.subr.bf16.mxu0 0
    %1589 = vmatpush1.bf16.msra.mxu0 %v363
    %1590 = vmatprep.subr.bf16.mxu0 0
    %1591 = vmatpush1.bf16.msra.mxu0 %v364
    %1592 = vmatprep.subr.bf16.mxu0 0
    %1593 = vmatpush1.bf16.msra.mxu0 %v365
    %1594 = vmatprep.subr.bf16.mxu0 0
    %1595 = vmatpush1.bf16.msra.mxu0 %v366
    %1596 = vmatprep.subr.bf16.mxu0 0
    %1597 = vmatpush1.bf16.msra.mxu0 %v367
    %1598 = vmatprep.subr.bf16.mxu0 0
    %1599 = vmatpush1.bf16.msra.mxu0 %v368
    %1600 = vmatprep.subr.bf16.mxu0 0
    %1601 = vmatpush1.bf16.msra.mxu0 %v369
    %1602 = vmatprep.subr.bf16.mxu0 0
    %1603 = vmatpush1.bf16.msra.mxu0 %v370
    %1604 = vmatprep.subr.bf16.mxu0 0
    %1605 = vmatpush1.bf16.msra.mxu0 %v371
    %1606 = vmatprep.subr.bf16.mxu0 0
    %1607 = vmatpush1.bf16.msra.mxu0 %v372
    %1608 = vmatprep.mubr.bf16.mxu0 %v1575
    %1609 = vmatmul.mubr.bf16.gmra.mrb[0].mxu0 %v1574
    %v1610 = vpop.f32.mrb[0].mxu0
    %v1611 = vadd.f32 %v150, %v1610
    %v1612 = vpop.f32.mrb[0].mxu0
    %v1613 = vpop.f32.mrb[0].mxu0
    %v1614 = vpop.f32.mrb[0].mxu0
    %1615 = vdwg.mxu0
    %v1616 = vmul.f32 %v1516, 1.0483141
    %v1617 = vmul.f32 %v1611, 0.19715731
    %v1618 = vsub.f32 %v1616, %v1617
    %s1619 = scalar_lea.vmem [#allocation5], 22
    %v1620 = vld [vmem:[%s1619] sm:$0x3]
    %v1621 = vmul.f32 %v1620, 0.12256774
    %v1622 = vadd.f32 %v1618, %v1621
    %v1623 = vmul.f32 %v152, %v1622
    %v1624 = vadd.f32 %v1623, %v153
    %v1625 = vpack.c.bf16 %v1624, %v1624
    %s1626 = scalar_lea.vmem [#allocation10], 24
    %v1627 = vld [vmem:[%s1626] sm:$0x3]
    %v1629 = vlaneseq
    %v1630 = vshrl.u32 %v1629, 7
    %v1631 = vsub.s32 0, %v1630
    %v1632 = vrot.slane %v1627, %v1631
    %v1633 = vlaneseq
    %v1634 = vshrl.u32 %v1633, 7
    %v1635 = vsub.s32 1, %v1634
    %v1636 = vrot.slane %v1627, %v1635
    %1639 = vmatprep.subr.bf16.mxu0 %v217
    %1640 = vmatpush1.bf16.msra.mxu0 %v216
    %1641 = vmatprep.subr.bf16.mxu0 %v219
    %1642 = vmatpush1.bf16.msra.mxu0 %v218
    %1643 = vmatprep.subr.bf16.mxu0 %v221
    %1644 = vmatpush1.bf16.msra.mxu0 %v220
    %1645 = vmatprep.subr.bf16.mxu0 %v223
    %1646 = vmatpush1.bf16.msra.mxu0 %v222
    %1647 = vmatprep.subr.bf16.mxu0 %v225
    %1648 = vmatpush1.bf16.msra.mxu0 %v224
    %1649 = vmatprep.subr.bf16.mxu0 %v227
    %1650 = vmatpush1.bf16.msra.mxu0 %v226
    %1651 = vmatprep.subr.bf16.mxu0 %v229
    %1652 = vmatpush1.bf16.msra.mxu0 %v228
    %1653 = vmatprep.subr.bf16.mxu0 %v231
    %1654 = vmatpush1.bf16.msra.mxu0 %v230
    %1655 = vmatprep.subr.bf16.mxu0 0
    %1656 = vmatpush1.bf16.msra.mxu0 0
    %1657 = vmatprep.subr.bf16.mxu0 0
    %1658 = vmatpush1.bf16.msra.mxu0 0
    %1659 = vmatprep.subr.bf16.mxu0 0
    %1660 = vmatpush1.bf16.msra.mxu0 0
    %1661 = vmatprep.subr.bf16.mxu0 0
    %1662 = vmatpush1.bf16.msra.mxu0 0
    %1663 = vmatprep.subr.bf16.mxu0 0
    %1664 = vmatpush1.bf16.msra.mxu0 0
    %1665 = vmatprep.subr.bf16.mxu0 0
    %1666 = vmatpush1.bf16.msra.mxu0 0
    %1667 = vmatprep.subr.bf16.mxu0 0
    %1668 = vmatpush1.bf16.msra.mxu0 0
    %1669 = vmatprep.subr.bf16.mxu0 0
    %1670 = vmatpush1.bf16.msra.mxu0 0
    %1671 = vmatprep.mubr.bf16.mxu0 0
    %1672 = vmatmul.mubr.bf16.gmra.mrb[0].mxu0 %v1625
    %v1673 = vpop.f32.mrb[0].mxu0
    %v1674 = vadd.f32 %v1632, %v1673
    %v1675 = vpop.f32.mrb[0].mxu0
    %v1676 = vadd.f32 %v1636, %v1675
    %v1677 = vpop.f32.mrb[0].mxu0
    %v1678 = vpop.f32.mrb[0].mxu0
    %1679 = vdwg.mxu0
    %v1680 = vtanh.pop %v1674
    %v1681 = vtanh.pop %v1676
    %v1682 = vpack.c.bf16 %v1680, %v1680
    %v1683 = vpack.c.bf16 %v1681, %v1681
    %1684 = vmatprep.subr.bf16.mxu0 0
    %1685 = vmatpush1.bf16.msra.mxu0 %v357
    %1686 = vmatprep.subr.bf16.mxu0 0
    %1687 = vmatpush1.bf16.msra.mxu0 %v358
    %1688 = vmatprep.subr.bf16.mxu0 0
    %1689 = vmatpush1.bf16.msra.mxu0 %v359
    %1690 = vmatprep.subr.bf16.mxu0 0
    %1691 = vmatpush1.bf16.msra.mxu0 %v360
    %1692 = vmatprep.subr.bf16.mxu0 0
    %1693 = vmatpush1.bf16.msra.mxu0 %v361
    %1694 = vmatprep.subr.bf16.mxu0 0
    %1695 = vmatpush1.bf16.msra.mxu0 %v362
    %1696 = vmatprep.subr.bf16.mxu0 0
    %1697 = vmatpush1.bf16.msra.mxu0 %v363
    %1698 = vmatprep.subr.bf16.mxu0 0
    %1699 = vmatpush1.bf16.msra.mxu0 %v364
    %1700 = vmatprep.subr.bf16.mxu0 0
    %1701 = vmatpush1.bf16.msra.mxu0 %v365
    %1702 = vmatprep.subr.bf16.mxu0 0
    %1703 = vmatpush1.bf16.msra.mxu0 %v366
    %1704 = vmatprep.subr.bf16.mxu0 0
    %1705 = vmatpush1.bf16.msra.mxu0 %v367
    %1706 = vmatprep.subr.bf16.mxu0 0
    %1707 = vmatpush1.bf16.msra.mxu0 %v368
    %1708 = vmatprep.subr.bf16.mxu0 0
    %1709 = vmatpush1.bf16.msra.mxu0 %v369
    %1710 = vmatprep.subr.bf16.mxu0 0
    %1711 = vmatpush1.bf16.msra.mxu0 %v370
    %1712 = vmatprep.subr.bf16.mxu0 0
    %1713 = vmatpush1.bf16.msra.mxu0 %v371
    %1714 = vmatprep.subr.bf16.mxu0 0
    %1715 = vmatpush1.bf16.msra.mxu0 %v372
    %1716 = vmatprep.mubr.bf16.mxu0 %v1683
    %1717 = vmatmul.mubr.bf16.gmra.mrb[0].mxu0 %v1682
    %v1718 = vpop.f32.mrb[0].mxu0
    %v1719 = vadd.f32 %v150, %v1718
    %v1720 = vpop.f32.mrb[0].mxu0
    %v1721 = vpop.f32.mrb[0].mxu0
    %v1722 = vpop.f32.mrb[0].mxu0
    %1723 = vdwg.mxu0
    %v1724 = vmul.f32 %v1624, 1.036609
    %v1725 = vmul.f32 %v1719, 0.18388747
    %v1726 = vsub.f32 %v1724, %v1725
    %s1727 = scalar_lea.vmem [#allocation5], 24
    %v1728 = vld [vmem:[%s1727] sm:$0x3]
    %v1729 = vmul.f32 %v1728, 0.10092525
    %v1730 = vadd.f32 %v1726, %v1729
    %v1731 = vmul.f32 %v152, %v1730
    %v1732 = vadd.f32 %v1731, %v153
    %v1733 = vpack.c.bf16 %v1732, %v1732
    %s1734 = scalar_lea.vmem [#allocation10], 26
    %v1735 = vld [vmem:[%s1734] sm:$0x3]
    %v1737 = vlaneseq
    %v1738 = vshrl.u32 %v1737, 7
    %v1739 = vsub.s32 0, %v1738
    %v1740 = vrot.slane %v1735, %v1739
    %v1741 = vlaneseq
    %v1742 = vshrl.u32 %v1741, 7
    %v1743 = vsub.s32 1, %v1742
    %v1744 = vrot.slane %v1735, %v1743
    %1747 = vmatprep.subr.bf16.mxu0 %v217
    %1748 = vmatpush1.bf16.msra.mxu0 %v216
    %1749 = vmatprep.subr.bf16.mxu0 %v219
    %1750 = vmatpush1.bf16.msra.mxu0 %v218
    %1751 = vmatprep.subr.bf16.mxu0 %v221
    %1752 = vmatpush1.bf16.msra.mxu0 %v220
    %1753 = vmatprep.subr.bf16.mxu0 %v223
    %1754 = vmatpush1.bf16.msra.mxu0 %v222
    %1755 = vmatprep.subr.bf16.mxu0 %v225
    %1756 = vmatpush1.bf16.msra.mxu0 %v224
    %1757 = vmatprep.subr.bf16.mxu0 %v227
    %1758 = vmatpush1.bf16.msra.mxu0 %v226
    %1759 = vmatprep.subr.bf16.mxu0 %v229
    %1760 = vmatpush1.bf16.msra.mxu0 %v228
    %1761 = vmatprep.subr.bf16.mxu0 %v231
    %1762 = vmatpush1.bf16.msra.mxu0 %v230
    %1763 = vmatprep.subr.bf16.mxu0 0
    %1764 = vmatpush1.bf16.msra.mxu0 0
    %1765 = vmatprep.subr.bf16.mxu0 0
    %1766 = vmatpush1.bf16.msra.mxu0 0
    %1767 = vmatprep.subr.bf16.mxu0 0
    %1768 = vmatpush1.bf16.msra.mxu0 0
    %1769 = vmatprep.subr.bf16.mxu0 0
    %1770 = vmatpush1.bf16.msra.mxu0 0
    %1771 = vmatprep.subr.bf16.mxu0 0
    %1772 = vmatpush1.bf16.msra.mxu0 0
    %1773 = vmatprep.subr.bf16.mxu0 0
    %1774 = vmatpush1.bf16.msra.mxu0 0
    %1775 = vmatprep.subr.bf16.mxu0 0
    %1776 = vmatpush1.bf16.msra.mxu0 0
    %1777 = vmatprep.subr.bf16.mxu0 0
    %1778 = vmatpush1.bf16.msra.mxu0 0
    %1779 = vmatprep.mubr.bf16.mxu0 0
    %1780 = vmatmul.mubr.bf16.gmra.mrb[0].mxu0 %v1733
    %v1781 = vpop.f32.mrb[0].mxu0
    %v1782 = vadd.f32 %v1740, %v1781
    %v1783 = vpop.f32.mrb[0].mxu0
    %v1784 = vadd.f32 %v1744, %v1783
    %v1785 = vpop.f32.mrb[0].mxu0
    %v1786 = vpop.f32.mrb[0].mxu0
    %1787 = vdwg.mxu0
    %v1788 = vtanh.pop %v1782
    %v1789 = vtanh.pop %v1784
    %v1790 = vpack.c.bf16 %v1788, %v1788
    %v1791 = vpack.c.bf16 %v1789, %v1789
    %1792 = vmatprep.subr.bf16.mxu0 0
    %1793 = vmatpush1.bf16.msra.mxu0 %v357
    %1794 = vmatprep.subr.bf16.mxu0 0
    %1795 = vmatpush1.bf16.msra.mxu0 %v358
    %1796 = vmatprep.subr.bf16.mxu0 0
    %1797 = vmatpush1.bf16.msra.mxu0 %v359
    %1798 = vmatprep.subr.bf16.mxu0 0
    %1799 = vmatpush1.bf16.msra.mxu0 %v360
    %1800 = vmatprep.subr.bf16.mxu0 0
    %1801 = vmatpush1.bf16.msra.mxu0 %v361
    %1802 = vmatprep.subr.bf16.mxu0 0
    %1803 = vmatpush1.bf16.msra.mxu0 %v362
    %1804 = vmatprep.subr.bf16.mxu0 0
    %1805 = vmatpush1.bf16.msra.mxu0 %v363
    %1806 = vmatprep.subr.bf16.mxu0 0
    %1807 = vmatpush1.bf16.msra.mxu0 %v364
    %1808 = vmatprep.subr.bf16.mxu0 0
    %1809 = vmatpush1.bf16.msra.mxu0 %v365
    %1810 = vmatprep.subr.bf16.mxu0 0
    %1811 = vmatpush1.bf16.msra.mxu0 %v366
    %1812 = vmatprep.subr.bf16.mxu0 0
    %1813 = vmatpush1.bf16.msra.mxu0 %v367
    %1814 = vmatprep.subr.bf16.mxu0 0
    %1815 = vmatpush1.bf16.msra.mxu0 %v368
    %1816 = vmatprep.subr.bf16.mxu0 0
    %1817 = vmatpush1.bf16.msra.mxu0 %v369
    %1818 = vmatprep.subr.bf16.mxu0 0
    %1819 = vmatpush1.bf16.msra.mxu0 %v370
    %1820 = vmatprep.subr.bf16.mxu0 0
    %1821 = vmatpush1.bf16.msra.mxu0 %v371
    %1822 = vmatprep.subr.bf16.mxu0 0
    %1823 = vmatpush1.bf16.msra.mxu0 %v372
    %1824 = vmatprep.mubr.bf16.mxu0 %v1791
    %1825 = vmatmul.mubr.bf16.gmra.mrb[0].mxu0 %v1790
    %v1826 = vpop.f32.mrb[0].mxu0
    %v1827 = vadd.f32 %v150, %v1826
    %v1828 = vpop.f32.mrb[0].mxu0
    %v1829 = vpop.f32.mrb[0].mxu0
    %v1830 = vpop.f32.mrb[0].mxu0
    %1831 = vdwg.mxu0
    %v1832 = vmul.f32 %v1732, 1.0258377
    %v1833 = vmul.f32 %v1827, 0.1702372
    %v1834 = vsub.f32 %v1832, %v1833
    %s1835 = scalar_lea.vmem [#allocation5], 26
    %v1836 = vld [vmem:[%s1835] sm:$0x3]
    %v1837 = vmul.f32 %v1836, 0.076423645
    %v1838 = vadd.f32 %v1834, %v1837
    %v1839 = vmul.f32 %v152, %v1838
    %v1840 = vadd.f32 %v1839, %v153
    %v1841 = vpack.c.bf16 %v1840, %v1840
    %s1842 = scalar_lea.vmem [#allocation10], 28
    %v1843 = vld [vmem:[%s1842] sm:$0x3]
    %v1845 = vlaneseq
    %v1846 = vshrl.u32 %v1845, 7
    %v1847 = vsub.s32 0, %v1846
    %v1848 = vrot.slane %v1843, %v1847
    %v1849 = vlaneseq
    %v1850 = vshrl.u32 %v1849, 7
    %v1851 = vsub.s32 1, %v1850
    %v1852 = vrot.slane %v1843, %v1851
    %1855 = vmatprep.subr.bf16.mxu0 %v217
    %1856 = vmatpush1.bf16.msra.mxu0 %v216
    %1857 = vmatprep.subr.bf16.mxu0 %v219
    %1858 = vmatpush1.bf16.msra.mxu0 %v218
    %1859 = vmatprep.subr.bf16.mxu0 %v221
    %1860 = vmatpush1.bf16.msra.mxu0 %v220
    %1861 = vmatprep.subr.bf16.mxu0 %v223
    %1862 = vmatpush1.bf16.msra.mxu0 %v222
    %1863 = vmatprep.subr.bf16.mxu0 %v225
    %1864 = vmatpush1.bf16.msra.mxu0 %v224
    %1865 = vmatprep.subr.bf16.mxu0 %v227
    %1866 = vmatpush1.bf16.msra.mxu0 %v226
    %1867 = vmatprep.subr.bf16.mxu0 %v229
    %1868 = vmatpush1.bf16.msra.mxu0 %v228
    %1869 = vmatprep.subr.bf16.mxu0 %v231
    %1870 = vmatpush1.bf16.msra.mxu0 %v230
    %1871 = vmatprep.subr.bf16.mxu0 0
    %1872 = vmatpush1.bf16.msra.mxu0 0
    %1873 = vmatprep.subr.bf16.mxu0 0
    %1874 = vmatpush1.bf16.msra.mxu0 0
    %1875 = vmatprep.subr.bf16.mxu0 0
    %1876 = vmatpush1.bf16.msra.mxu0 0
    %1877 = vmatprep.subr.bf16.mxu0 0
    %1878 = vmatpush1.bf16.msra.mxu0 0
    %1879 = vmatprep.subr.bf16.mxu0 0
    %1880 = vmatpush1.bf16.msra.mxu0 0
    %1881 = vmatprep.subr.bf16.mxu0 0
    %1882 = vmatpush1.bf16.msra.mxu0 0
    %1883 = vmatprep.subr.bf16.mxu0 0
    %1884 = vmatpush1.bf16.msra.mxu0 0
    %1885 = vmatprep.subr.bf16.mxu0 0
    %1886 = vmatpush1.bf16.msra.mxu0 0
    %1887 = vmatprep.mubr.bf16.mxu0 0
    %1888 = vmatmul.mubr.bf16.gmra.mrb[0].mxu0 %v1841
    %v1889 = vpop.f32.mrb[0].mxu0
    %v1890 = vadd.f32 %v1848, %v1889
    %v1891 = vpop.f32.mrb[0].mxu0
    %v1892 = vadd.f32 %v1852, %v1891
    %v1893 = vpop.f32.mrb[0].mxu0
    %v1894 = vpop.f32.mrb[0].mxu0
    %1895 = vdwg.mxu0
    %v1896 = vtanh.pop %v1890
    %v1897 = vtanh.pop %v1892
    %v1898 = vpack.c.bf16 %v1896, %v1896
    %v1899 = vpack.c.bf16 %v1897, %v1897
    %1900 = vmatprep.subr.bf16.mxu0 0
    %1901 = vmatpush1.bf16.msra.mxu0 %v357
    %1902 = vmatprep.subr.bf16.mxu0 0
    %1903 = vmatpush1.bf16.msra.mxu0 %v358
    %1904 = vmatprep.subr.bf16.mxu0 0
    %1905 = vmatpush1.bf16.msra.mxu0 %v359
    %1906 = vmatprep.subr.bf16.mxu0 0
    %1907 = vmatpush1.bf16.msra.mxu0 %v360
    %1908 = vmatprep.subr.bf16.mxu0 0
    %1909 = vmatpush1.bf16.msra.mxu0 %v361
    %1910 = vmatprep.subr.bf16.mxu0 0
    %1911 = vmatpush1.bf16.msra.mxu0 %v362
    %1912 = vmatprep.subr.bf16.mxu0 0
    %1913 = vmatpush1.bf16.msra.mxu0 %v363
    %1914 = vmatprep.subr.bf16.mxu0 0
    %1915 = vmatpush1.bf16.msra.mxu0 %v364
    %1916 = vmatprep.subr.bf16.mxu0 0
    %1917 = vmatpush1.bf16.msra.mxu0 %v365
    %1918 = vmatprep.subr.bf16.mxu0 0
    %1919 = vmatpush1.bf16.msra.mxu0 %v366
    %1920 = vmatprep.subr.bf16.mxu0 0
    %1921 = vmatpush1.bf16.msra.mxu0 %v367
    %1922 = vmatprep.subr.bf16.mxu0 0
    %1923 = vmatpush1.bf16.msra.mxu0 %v368
    %1924 = vmatprep.subr.bf16.mxu0 0
    %1925 = vmatpush1.bf16.msra.mxu0 %v369
    %1926 = vmatprep.subr.bf16.mxu0 0
    %1927 = vmatpush1.bf16.msra.mxu0 %v370
    %1928 = vmatprep.subr.bf16.mxu0 0
    %1929 = vmatpush1.bf16.msra.mxu0 %v371
    %1930 = vmatprep.subr.bf16.mxu0 0
    %1931 = vmatpush1.bf16.msra.mxu0 %v372
    %1932 = vmatprep.mubr.bf16.mxu0 %v1899
    %1933 = vmatmul.mubr.bf16.gmra.mrb[0].mxu0 %v1898
    %v1934 = vpop.f32.mrb[0].mxu0
    %v1935 = vadd.f32 %v150, %v1934
    %v1936 = vpop.f32.mrb[0].mxu0
    %v1937 = vpop.f32.mrb[0].mxu0
    %v1938 = vpop.f32.mrb[0].mxu0
    %1939 = vdwg.mxu0
    %v1940 = vmul.f32 %v1840, 1.0157086
    %v1941 = vmul.f32 %v1935, 0.15176146
    %v1942 = vsub.f32 %v1940, %v1941
    %s1943 = scalar_lea.vmem [#allocation5], 28
    %v1944 = vld [vmem:[%s1943] sm:$0x3]
    %v1945 = vmul.f32 %v1944, 0.04645501
    %v1946 = vadd.f32 %v1942, %v1945
    %v1947 = vmul.f32 %v152, %v1946
    %v1948 = vadd.f32 %v1947, %v153
    %v1949 = vpack.c.bf16 %v1948, %v1948
    %s1950 = scalar_lea.vmem [#allocation10], 30
    %v1951 = vld [vmem:[%s1950] sm:$0x3]
    %v1953 = vlaneseq
    %v1954 = vshrl.u32 %v1953, 7
    %v1955 = vsub.s32 0, %v1954
    %v1956 = vrot.slane %v1951, %v1955
    %v1957 = vlaneseq
    %v1958 = vshrl.u32 %v1957, 7
    %v1959 = vsub.s32 1, %v1958
    %v1960 = vrot.slane %v1951, %v1959
    %1963 = vmatprep.subr.bf16.mxu0 %v217
    %1964 = vmatpush1.bf16.msra.mxu0 %v216
    %1965 = vmatprep.subr.bf16.mxu0 %v219
    %1966 = vmatpush1.bf16.msra.mxu0 %v218
    %1967 = vmatprep.subr.bf16.mxu0 %v221
    %1968 = vmatpush1.bf16.msra.mxu0 %v220
    %1969 = vmatprep.subr.bf16.mxu0 %v223
    %1970 = vmatpush1.bf16.msra.mxu0 %v222
    %1971 = vmatprep.subr.bf16.mxu0 %v225
    %1972 = vmatpush1.bf16.msra.mxu0 %v224
    %1973 = vmatprep.subr.bf16.mxu0 %v227
    %1974 = vmatpush1.bf16.msra.mxu0 %v226
    %1975 = vmatprep.subr.bf16.mxu0 %v229
    %1976 = vmatpush1.bf16.msra.mxu0 %v228
    %1977 = vmatprep.subr.bf16.mxu0 %v231
    %1978 = vmatpush1.bf16.msra.mxu0 %v230
    %1979 = vmatprep.subr.bf16.mxu0 0
    %1980 = vmatpush1.bf16.msra.mxu0 0
    %1981 = vmatprep.subr.bf16.mxu0 0
    %1982 = vmatpush1.bf16.msra.mxu0 0
    %1983 = vmatprep.subr.bf16.mxu0 0
    %1984 = vmatpush1.bf16.msra.mxu0 0
    %1985 = vmatprep.subr.bf16.mxu0 0
    %1986 = vmatpush1.bf16.msra.mxu0 0
    %1987 = vmatprep.subr.bf16.mxu0 0
    %1988 = vmatpush1.bf16.msra.mxu0 0
    %1989 = vmatprep.subr.bf16.mxu0 0
    %1990 = vmatpush1.bf16.msra.mxu0 0
    %1991 = vmatprep.subr.bf16.mxu0 0
    %1992 = vmatpush1.bf16.msra.mxu0 0
    %1993 = vmatprep.subr.bf16.mxu0 0
    %1994 = vmatpush1.bf16.msra.mxu0 0
    %1995 = vmatprep.mubr.bf16.mxu0 0
    %1996 = vmatmul.mubr.bf16.gmra.mrb[0].mxu0 %v1949
    %v1997 = vpop.f32.mrb[0].mxu0
    %v1998 = vadd.f32 %v1956, %v1997
    %v1999 = vpop.f32.mrb[0].mxu0
    %v2000 = vadd.f32 %v1960, %v1999
    %v2001 = vpop.f32.mrb[0].mxu0
    %v2002 = vpop.f32.mrb[0].mxu0
    %2003 = vdwg.mxu0
    %v2004 = vtanh.pop %v1998
    %v2005 = vtanh.pop %v2000
    %v2006 = vpack.c.bf16 %v2004, %v2004
    %v2007 = vpack.c.bf16 %v2005, %v2005
    %2008 = vmatprep.subr.bf16.mxu0 0
    %2009 = vmatpush1.bf16.msra.mxu0 %v357
    %2010 = vmatprep.subr.bf16.mxu0 0
    %2011 = vmatpush1.bf16.msra.mxu0 %v358
    %2012 = vmatprep.subr.bf16.mxu0 0
    %2013 = vmatpush1.bf16.msra.mxu0 %v359
    %2014 = vmatprep.subr.bf16.mxu0 0
    %2015 = vmatpush1.bf16.msra.mxu0 %v360
    %2016 = vmatprep.subr.bf16.mxu0 0
    %2017 = vmatpush1.bf16.msra.mxu0 %v361
    %2018 = vmatprep.subr.bf16.mxu0 0
    %2019 = vmatpush1.bf16.msra.mxu0 %v362
    %2020 = vmatprep.subr.bf16.mxu0 0
    %2021 = vmatpush1.bf16.msra.mxu0 %v363
    %2022 = vmatprep.subr.bf16.mxu0 0
    %2023 = vmatpush1.bf16.msra.mxu0 %v364
    %2024 = vmatprep.subr.bf16.mxu0 0
    %2025 = vmatpush1.bf16.msra.mxu0 %v365
    %2026 = vmatprep.subr.bf16.mxu0 0
    %2027 = vmatpush1.bf16.msra.mxu0 %v366
    %2028 = vmatprep.subr.bf16.mxu0 0
    %2029 = vmatpush1.bf16.msra.mxu0 %v367
    %2030 = vmatprep.subr.bf16.mxu0 0
    %2031 = vmatpush1.bf16.msra.mxu0 %v368
    %2032 = vmatprep.subr.bf16.mxu0 0
    %2033 = vmatpush1.bf16.msra.mxu0 %v369
    %2034 = vmatprep.subr.bf16.mxu0 0
    %2035 = vmatpush1.bf16.msra.mxu0 %v370
    %2036 = vmatprep.subr.bf16.mxu0 0
    %2037 = vmatpush1.bf16.msra.mxu0 %v371
    %2038 = vmatprep.subr.bf16.mxu0 0
    %2039 = vmatpush1.bf16.msra.mxu0 %v372
    %2040 = vmatprep.mubr.bf16.mxu0 %v2007
    %2041 = vmatmul.mubr.bf16.gmra.mrb[0].mxu0 %v2006
    %v2042 = vpop.f32.mrb[0].mxu0
    %v2043 = vadd.f32 %v150, %v2042
    %v2044 = vpop.f32.mrb[0].mxu0
    %v2045 = vpop.f32.mrb[0].mxu0
    %v2046 = vpop.f32.mrb[0].mxu0
    %2047 = vdwg.mxu0
    %v2048 = vmul.f32 %v1948, 1.0059872
    %v2049 = vmul.f32 %v2043, 0.10959106
    %v2050 = vsub.f32 %v2048, %v2049
    %v2051 = vmul.f32 %v152, %v2050
    %v2052 = vadd.f32 %v2051, %v153
    %2053 = vst [vmem:[#allocation11] sm:$0x3] %v2052
    // Predicated region
    $region54: #{tpu_custom_call.1} parent=1 // pred_check
      _
    $region55: #{tpu_custom_call.1} parent=1 // pred_check_branch
      %2055 = sbr.rel (0) target = $region57
    $region56: #{tpu_custom_call.1} parent=1 // pred_region
      %s2057 = ssub.s32 32, 32
      %2058 = vsyncadd [#allocation4], %s2057
      %s2060 = sshll.u32 [#allocation11], 4
      %s2061 = int_to_ptr.vmem [resolvable:$true] %s2060
      %2063 = dma.vmem_to_hbm [thread:$0]  %s2061, 32, %s8, [#allocation4]
    $region57: #{tpu_custom_call.1} parent=1 // pred_fallthru
      _
    // Predicated region
    $region58: #{tpu_custom_call.1} parent=1 // pred_check
      _
    $region59: #{tpu_custom_call.1} parent=1 // pred_check_branch
      %2065 = sbr.rel (0) target = $region61
    $region60: #{tpu_custom_call.1} parent=1 // pred_region
      %2066 = dma.done [#allocation4], 32
    $region61: #{tpu_custom_call.1} parent=1 // pred_fallthru
      _
    %2067 = vsyncpa [#allocation3], 1
    %2068 = vsyncpa [#allocation6], 1
    %2069 = vsyncpa [#allocation9], 1
    %2070 = vsyncpa [#allocation4], 1

</llo_original>
